<compile_context>
chip_gen: v5e
topology: v5e:2x2
jax: 0.10.0
libtpu: 0.0.40
codegen_flags: <defaults>
</compile_context>

<pallas_src>
import functools

import jax
import jax.numpy as jnp
from jax.experimental import pallas as pl
from jax.experimental.pallas import tpu as pltpu

Z_DIM = 64
HIDDEN = 256
IMAGE_DIM = 28 * 28 * 1        # 784
IMAGE_DIM_PAD = 7 * 128        # 896, lane-dense output width


def generator_kernel(x_ref, w1_ref, b1_ref, w2_ref, b2_ref, o_ref):
    # Linear 1: [TB, 64] bf16 @ [64, 256] bf16 -> f32 accumulate, + f32 bias.
    h = jnp.dot(x_ref[...], w1_ref[...], preferred_element_type=jnp.float32)
    h = h + b1_ref[...]
    # LeakyReLU(negative_slope=0.1), in f32.
    h = jnp.where(h >= 0, h, 0.1 * h)
    # Linear 2: [TB, 256] bf16 @ [256, 896] bf16 -> f32 accumulate, + f32 bias.
    y = jnp.dot(h.astype(jnp.bfloat16), w2_ref[...],
                preferred_element_type=jnp.float32)
    y = y + b2_ref[...]
    # Tanh, then cast to the (bf16) output dtype.
    o_ref[...] = jnp.tanh(y).astype(o_ref.dtype)


@functools.partial(jax.jit, static_argnames=("batch_tile", "out_dtype"))
def generator_forward(x, w1, b1, w2, b2, *, batch_tile=256,
                      out_dtype=jnp.bfloat16):
    """x: [B, 64] f32/bf16; w1: [64,256]; b1: [256] or [1,256];
    w2: [256,784]; b2: [784] or [1,784]. Returns [B, 784] in out_dtype."""
    B = x.shape[0]
    B_pad = ((B + batch_tile - 1) // batch_tile) * batch_tile

    # Pad batch to a multiple of batch_tile; cast matmul inputs to bf16.
    x_p = jnp.zeros((B_pad, Z_DIM), jnp.bfloat16).at[:B].set(
        x.astype(jnp.bfloat16))
    w1_b = w1.astype(jnp.bfloat16)
    b1_f = jnp.reshape(b1, (1, HIDDEN)).astype(jnp.float32)
    # Pad output feature dim 784 -> 896 with zero weights / zero bias
    # (tanh(0) = 0 in the padded tail; sliced off below).
    w2_p = jnp.zeros((HIDDEN, IMAGE_DIM_PAD), jnp.bfloat16).at[
        :, :IMAGE_DIM].set(w2.astype(jnp.bfloat16))
    b2_p = jnp.zeros((1, IMAGE_DIM_PAD), jnp.float32).at[
        :, :IMAGE_DIM].set(jnp.reshape(b2, (1, IMAGE_DIM)).astype(jnp.float32))

    grid = (B_pad // batch_tile,)

    out_p = pl.pallas_call(
        generator_kernel,
        out_shape=jax.ShapeDtypeStruct((B_pad, IMAGE_DIM_PAD), out_dtype),
        grid_spec=pl.GridSpec(
            grid=grid,
            in_specs=[
                # x tile: batch on sublanes, z features (full 64) on lanes.
                pl.BlockSpec((batch_tile, Z_DIM), lambda i: (i, 0)),
                # Weights / biases: constant index_map -> DMA'd once, resident.
                pl.BlockSpec((Z_DIM, HIDDEN), lambda i: (0, 0)),
                pl.BlockSpec((1, HIDDEN), lambda i: (0, 0)),
                pl.BlockSpec((HIDDEN, IMAGE_DIM_PAD), lambda i: (0, 0)),
                pl.BlockSpec((1, IMAGE_DIM_PAD), lambda i: (0, 0)),
            ],
            out_specs=pl.BlockSpec((batch_tile, IMAGE_DIM_PAD),
                                   lambda i: (i, 0)),
        ),
        compiler_params=pltpu.CompilerParams(
            dimension_semantics=("parallel",),  # batch axis sharded on v7x TCs
        ),
    )(x_p, w1_b, b1_f, w2_p, b2_p)

    return out_p[:B, :IMAGE_DIM]


def init_params(key):
    """Deterministic init mimicking PyTorch Linear default (uniform +-1/sqrt(fan_in))."""
    k1, k2, k3, k4 = jax.random.split(key, 4)
    lim1 = 1.0 / jnp.sqrt(Z_DIM)
    lim2 = 1.0 / jnp.sqrt(HIDDEN)
    w1 = jax.random.uniform(k1, (Z_DIM, HIDDEN), jnp.float32, -lim1, lim1)
    b1 = jax.random.uniform(k2, (HIDDEN,), jnp.float32, -lim1, lim1)
    w2 = jax.random.uniform(k3, (HIDDEN, IMAGE_DIM), jnp.float32, -lim2, lim2)
    b2 = jax.random.uniform(k4, (IMAGE_DIM,), jnp.float32, -lim2, lim2)
    return w1, b1, w2, b2


def reference_forward(x, w1, b1, w2, b2):
    h = x @ w1 + b1[None, :]
    h = jnp.where(h >= 0, h, 0.1 * h)
    return jnp.tanh(h @ w2 + b2[None, :])


if __name__ == "__main__":
    key = jax.random.PRNGKey(0)
    k_params, k_x = jax.random.split(key)

    w1, b1, w2, b2 = init_params(k_params)

    B = 8  # small test batch; wrapper pads to the 256-row tile internally
    x = jax.random.normal(k_x, (B, Z_DIM), jnp.float32)

    out = generator_forward(x, w1, b1, w2, b2)
    out = jax.block_until_ready(out)

    ref = reference_forward(x, w1, b1, w2, b2)
    assert out.shape == (B, IMAGE_DIM), out.shape
    # bf16 matmul inputs + bf16 output -> loose tolerance vs f32 reference.
    assert jnp.allclose(out.astype(jnp.float32), ref, atol=3e-2, rtol=0.0), (
        float(jnp.max(jnp.abs(out.astype(jnp.float32) - ref))))

    print("KERNEL_OK")
</pallas_src>

<mosaic_0001>
module attributes {stable_mosaic.version = 11 : i64} {
  func.func @generator_kernel(%arg0: i32, %arg1: memref<256x64xbf16, #tpu.memory_space<vmem>>, %arg2: memref<64x256xbf16, #tpu.memory_space<vmem>>, %arg3: memref<1x256xf32, #tpu.memory_space<vmem>>, %arg4: memref<256x896xbf16, #tpu.memory_space<vmem>>, %arg5: memref<1x896xf32, #tpu.memory_space<vmem>>, %arg6: memref<256x896xbf16, #tpu.memory_space<vmem>>) attributes {dimension_semantics = [#tpu.dimension_semantics<parallel>], iteration_bounds = array<i64: 1>, scalar_prefetch = 0 : i64, scratch_operands = 0 : i64, tpu.core_type = #tpu.core_type<tc>, window_params = [{transform_indices = @transform_0, window_bounds = array<i64: 256, 64>}, {pipeline_mode = #tpu.pipeline_mode<synchronous>, transform_indices = @transform_1, window_bounds = array<i64: 64, 256>}, {pipeline_mode = #tpu.pipeline_mode<synchronous>, transform_indices = @transform_2, window_bounds = array<i64: 1, 256>}, {pipeline_mode = #tpu.pipeline_mode<synchronous>, transform_indices = @transform_3, window_bounds = array<i64: 256, 896>}, {pipeline_mode = #tpu.pipeline_mode<synchronous>, transform_indices = @transform_4, window_bounds = array<i64: 1, 896>}, {transform_indices = @transform_5, window_bounds = array<i64: 256, 896>}]} {
    %c0 = arith.constant 0 : index
    %c0_0 = arith.constant 0 : index
    %0 = vector.load %arg1[%c0, %c0_0] : memref<256x64xbf16, #tpu.memory_space<vmem>>, vector<256x64xbf16>
    %c0_1 = arith.constant 0 : index
    %c0_2 = arith.constant 0 : index
    %1 = vector.load %arg2[%c0_1, %c0_2] : memref<64x256xbf16, #tpu.memory_space<vmem>>, vector<64x256xbf16>
    %cst = arith.constant dense<0.000000e+00> : vector<256x256xf32>
    %2 = tpu.matmul %0, %1, %cst {dimension_numbers = #tpu.dot_dimension_numbers<[1], [0], [0], [1], [0, 0, 1, 1], [], []>} : vector<256x64xbf16>, vector<64x256xbf16>, vector<256x256xf32> -> vector<256x256xf32>
    %c0_3 = arith.constant 0 : index
    %c0_4 = arith.constant 0 : index
    %3 = vector.load %arg3[%c0_3, %c0_4] : memref<1x256xf32, #tpu.memory_space<vmem>>, vector<1x256xf32>
    %4 = vector.broadcast %3 : vector<1x256xf32> to vector<256x256xf32>
    %5 = arith.addf %2, %4 : vector<256x256xf32>
    %cst_5 = arith.constant 0.000000e+00 : f32
    %6 = vector.broadcast %cst_5 : f32 to vector<256x256xf32>
    %7 = arith.cmpf oge, %5, %6 : vector<256x256xf32>
    %cst_6 = arith.constant 1.000000e-01 : f32
    %8 = vector.broadcast %cst_6 : f32 to vector<256x256xf32>
    %9 = arith.mulf %8, %5 : vector<256x256xf32>
    %10 = arith.select %7, %5, %9 : vector<256x256xi1>, vector<256x256xf32>
    %11 = arith.truncf %10 : vector<256x256xf32> to vector<256x256xbf16>
    %c0_7 = arith.constant 0 : index
    %c0_8 = arith.constant 0 : index
    %12 = vector.load %arg4[%c0_7, %c0_8] : memref<256x896xbf16, #tpu.memory_space<vmem>>, vector<256x896xbf16>
    %cst_9 = arith.constant dense<0.000000e+00> : vector<256x896xf32>
    %13 = tpu.matmul %11, %12, %cst_9 {dimension_numbers = #tpu.dot_dimension_numbers<[1], [0], [0], [1], [0, 0, 1, 1], [], []>} : vector<256x256xbf16>, vector<256x896xbf16>, vector<256x896xf32> -> vector<256x896xf32>
    %c0_10 = arith.constant 0 : index
    %c0_11 = arith.constant 0 : index
    %14 = vector.load %arg5[%c0_10, %c0_11] : memref<1x896xf32, #tpu.memory_space<vmem>>, vector<1x896xf32>
    %15 = vector.broadcast %14 : vector<1x896xf32> to vector<256x896xf32>
    %16 = arith.addf %13, %15 : vector<256x896xf32>
    %17 = math.tanh %16 : vector<256x896xf32>
    %18 = arith.truncf %17 : vector<256x896xf32> to vector<256x896xbf16>
    %c0_12 = arith.constant 0 : index
    %c0_13 = arith.constant 0 : index
    %19 = vector.load %arg6[%c0_12, %c0_13] : memref<256x896xbf16, #tpu.memory_space<vmem>>, vector<256x896xbf16>
    tpu.vector_store %arg6[%c0_12, %c0_13], %18 {strides = array<i32>} : memref<256x896xbf16, #tpu.memory_space<vmem>>, vector<256x896xbf16>,
    return
  }
  func.func @transform_0(%arg0: i32) -> (i32, i32) {
    %c0_i32 = arith.constant 0 : i32
    %c0_i32_0 = arith.constant 0 : i32
    return %arg0, %c0_i32 : i32, i32
  }
  func.func @transform_1(%arg0: i32) -> (i32, i32) {
    %c0_i32 = arith.constant 0 : i32
    %c0_i32_0 = arith.constant 0 : i32
    %c0_i32_1 = arith.constant 0 : i32
    return %c0_i32, %c0_i32_0 : i32, i32
  }
  func.func @transform_2(%arg0: i32) -> (i32, i32) {
    %c0_i32 = arith.constant 0 : i32
    %c0_i32_0 = arith.constant 0 : i32
    %c0_i32_1 = arith.constant 0 : i32
    return %c0_i32, %c0_i32_0 : i32, i32
  }
  func.func @transform_3(%arg0: i32) -> (i32, i32) {
    %c0_i32 = arith.constant 0 : i32
    %c0_i32_0 = arith.constant 0 : i32
    %c0_i32_1 = arith.constant 0 : i32
    return %c0_i32, %c0_i32_0 : i32, i32
  }
  func.func @transform_4(%arg0: i32) -> (i32, i32) {
    %c0_i32 = arith.constant 0 : i32
    %c0_i32_0 = arith.constant 0 : i32
    %c0_i32_1 = arith.constant 0 : i32
    return %c0_i32, %c0_i32_0 : i32, i32
  }
  func.func @transform_5(%arg0: i32) -> (i32, i32) {
    %c0_i32 = arith.constant 0 : i32
    %c0_i32_0 = arith.constant 0 : i32
    return %arg0, %c0_i32 : i32, i32
  }
}

</mosaic_0001>

<llo_original>
// kernel: generator_forward.1
$region0: #{generator_forward.1}
  #allocation0 [shape = 'u32[]', space=smem, size = 0x4, offset = 0x4, fixed_abs, tag = 'smem constant byte address 0x4 - core index']
  #allocation1 [shape = 'u32[72,128]{1,0:T(1,128)}', space=vmem, size = 0x9000, scoped, tag = 'internal scratch']
  %s0 = inlined_call_operand.vmem [shape: bf16[256,64], index: 0, kind: input, shape index: {}]
  %s1 = inlined_call_operand.vmem [shape: bf16[64,256], index: 1, kind: input, shape index: {}]
  %s2 = inlined_call_operand.vmem [shape: f32[1,256], index: 2, kind: input, shape index: {}]
  %s3 = inlined_call_operand.vmem [shape: bf16[256,896], index: 3, kind: input, shape index: {}]
  %s4 = inlined_call_operand.vmem [shape: f32[1,896], index: 4, kind: input, shape index: {}]
  %s5 = inlined_call_operand.vmem [shape: bf16[256,896], index: 5, kind: output, shape index: {}]
  %s6 = sld [smem:[#allocation0]]
  $region30: #{generator_forward.1} parent=0
    _
  %s8 = ssub.s32 1, %s6
  %s9 = scalar_select 0, %s8, %s6
  // Predicated region
  $region2: #{generator_forward.1} parent=0 // pred_check
    _
  $region3: #{generator_forward.1} parent=0 // pred_check_branch
    %11 = sbr.rel (0) target = $region5
  $region4: #{generator_forward.1} parent=0 // pred_region
    _
  $region5: #{generator_forward.1} parent=0 // pred_fallthru
    _
  // Predicated region
  $region6: #{generator_forward.1} parent=0 // pred_check
    _
  $region7: #{generator_forward.1} parent=0 // pred_check_branch
    %13 = sbr.rel (0) target = $region9
  $region8: #{generator_forward.1} parent=0 // pred_region
    _
  $region9: #{generator_forward.1} parent=0 // pred_fallthru
    _
  // Predicated region
  $region10: #{generator_forward.1} parent=0 // pred_check
    _
  $region11: #{generator_forward.1} parent=0 // pred_check_branch
    %15 = sbr.rel (0) target = $region13
  $region12: #{generator_forward.1} parent=0 // pred_region
    _
  $region13: #{generator_forward.1} parent=0 // pred_fallthru
    _
  // Predicated region
  $region14: #{generator_forward.1} parent=0 // pred_check
    _
  $region15: #{generator_forward.1} parent=0 // pred_check_branch
    %17 = sbr.rel (0) target = $region17
  $region16: #{generator_forward.1} parent=0 // pred_region
    _
  $region17: #{generator_forward.1} parent=0 // pred_fallthru
    _
  // Predicated region
  $region18: #{generator_forward.1} parent=0 // pred_check
    _
  $region19: #{generator_forward.1} parent=0 // pred_check_branch
    %19 = sbr.rel (0) target = $region21
  $region20: #{generator_forward.1} parent=0 // pred_region
    _
  $region21: #{generator_forward.1} parent=0 // pred_fallthru
    _
  %v21 = vld [vmem:[%s0] sm:$0xf]
  %v22 = vld [vmem:[%s0 + $0x4] sm:$0xf]
  %v23 = vld [vmem:[%s0 + $0x8] sm:$0xf]
  %v24 = vld [vmem:[%s0 + $0xc] sm:$0xf]
  %v25 = vld [vmem:[%s0 + $0x10] sm:$0xf]
  %v26 = vld [vmem:[%s0 + $0x14] sm:$0xf]
  %v27 = vld [vmem:[%s0 + $0x18] sm:$0xf]
  %v28 = vld [vmem:[%s0 + $0x1c] sm:$0xf]
  %v29 = vld [vmem:[%s0 + $0x20] sm:$0xf]
  %v30 = vld [vmem:[%s0 + $0x24] sm:$0xf]
  %v31 = vld [vmem:[%s0 + $0x28] sm:$0xf]
  %v32 = vld [vmem:[%s0 + $0x2c] sm:$0xf]
  %v33 = vld [vmem:[%s0 + $0x30] sm:$0xf]
  %v34 = vld [vmem:[%s0 + $0x34] sm:$0xf]
  %v35 = vld [vmem:[%s0 + $0x38] sm:$0xf]
  %v36 = vld [vmem:[%s0 + $0x3c] sm:$0xf]
  %v37 = vld [vmem:[%s0 + $0x40] sm:$0xf]
  %v38 = vld [vmem:[%s0 + $0x44] sm:$0xf]
  %v39 = vld [vmem:[%s0 + $0x48] sm:$0xf]
  %v40 = vld [vmem:[%s0 + $0x4c] sm:$0xf]
  %v41 = vld [vmem:[%s0 + $0x50] sm:$0xf]
  %v42 = vld [vmem:[%s0 + $0x54] sm:$0xf]
  %v43 = vld [vmem:[%s0 + $0x58] sm:$0xf]
  %v44 = vld [vmem:[%s0 + $0x5c] sm:$0xf]
  %v45 = vld [vmem:[%s0 + $0x60] sm:$0xf]
  %v46 = vld [vmem:[%s0 + $0x64] sm:$0xf]
  %v47 = vld [vmem:[%s0 + $0x68] sm:$0xf]
  %v48 = vld [vmem:[%s0 + $0x6c] sm:$0xf]
  %v49 = vld [vmem:[%s0 + $0x70] sm:$0xf]
  %v50 = vld [vmem:[%s0 + $0x74] sm:$0xf]
  %v51 = vld [vmem:[%s0 + $0x78] sm:$0xf]
  %v52 = vld [vmem:[%s0 + $0x7c] sm:$0xf]
  %v53 = vld [vmem:[%s1] sm:$0xff]
  %v54 = vld [vmem:[%s1 + $0x8] sm:$0xff]
  %v55 = vld [vmem:[%s1 + $0x10] sm:$0xff]
  %v56 = vld [vmem:[%s1 + $0x18] sm:$0xff]
  %v57 = vld [vmem:[%s1 + $0x20] sm:$0xff]
  %v58 = vld [vmem:[%s1 + $0x28] sm:$0xff]
  %v59 = vld [vmem:[%s1 + $0x30] sm:$0xff]
  %v60 = vld [vmem:[%s1 + $0x38] sm:$0xff]
  %v61 = vld [vmem:[%s2] sm:$0x3]
  %v63 = vperm.slane %v61, 0
  %v64 = vperm.slane %v61, 1
  %v99 = vunpack.c.l.b16 %v21
  %v100 = vunpack.c.l.b16 %v22
  %v101 = vunpack.c.l.b16 %v23
  %v102 = vunpack.c.l.b16 %v24
  %v103 = vunpack.c.l.b16 %v25
  %v104 = vunpack.c.l.b16 %v26
  %v105 = vunpack.c.l.b16 %v27
  %v106 = vunpack.c.l.b16 %v28
  %v107 = vunpack.c.l.b16 %v29
  %v108 = vunpack.c.l.b16 %v30
  %v109 = vunpack.c.l.b16 %v31
  %v110 = vunpack.c.l.b16 %v32
  %v111 = vunpack.c.l.b16 %v33
  %v112 = vunpack.c.l.b16 %v34
  %v113 = vunpack.c.l.b16 %v35
  %v114 = vunpack.c.l.b16 %v36
  %v115 = vunpack.c.l.b16 %v37
  %v116 = vunpack.c.l.b16 %v38
  %v117 = vunpack.c.l.b16 %v39
  %v118 = vunpack.c.l.b16 %v40
  %v119 = vunpack.c.l.b16 %v41
  %v120 = vunpack.c.l.b16 %v42
  %v121 = vunpack.c.l.b16 %v43
  %v122 = vunpack.c.l.b16 %v44
  %v123 = vunpack.c.l.b16 %v45
  %v124 = vunpack.c.l.b16 %v46
  %v125 = vunpack.c.l.b16 %v47
  %v126 = vunpack.c.l.b16 %v48
  %v127 = vunpack.c.l.b16 %v49
  %v128 = vunpack.c.l.b16 %v50
  %v129 = vunpack.c.l.b16 %v51
  %v130 = vunpack.c.l.b16 %v52
  %v131 = vpack.c.b16 %v100, %v99
  %v132 = vpack.c.b16 %v102, %v101
  %v133 = vpack.c.b16 %v104, %v103
  %v134 = vpack.c.b16 %v106, %v105
  %v135 = vpack.c.b16 %v108, %v107
  %v136 = vpack.c.b16 %v110, %v109
  %v137 = vpack.c.b16 %v112, %v111
  %v138 = vpack.c.b16 %v114, %v113
  %v139 = vpack.c.b16 %v116, %v115
  %v140 = vpack.c.b16 %v118, %v117
  %v141 = vpack.c.b16 %v120, %v119
  %v142 = vpack.c.b16 %v122, %v121
  %v143 = vpack.c.b16 %v124, %v123
  %v144 = vpack.c.b16 %v126, %v125
  %v145 = vpack.c.b16 %v128, %v127
  %v146 = vpack.c.b16 %v130, %v129
  %v155 = vunpack.c.l.b16 %v53
  %v156 = vunpack.c.h.b16 %v53
  %v157 = vunpack.c.l.b16 %v54
  %v158 = vunpack.c.h.b16 %v54
  %v159 = vunpack.c.l.b16 %v55
  %v160 = vunpack.c.h.b16 %v55
  %v161 = vunpack.c.l.b16 %v56
  %v162 = vunpack.c.h.b16 %v56
  %v163 = vunpack.c.l.b16 %v57
  %v164 = vunpack.c.h.b16 %v57
  %v165 = vunpack.c.l.b16 %v58
  %v166 = vunpack.c.h.b16 %v58
  %v167 = vunpack.c.l.b16 %v59
  %v168 = vunpack.c.h.b16 %v59
  %v169 = vunpack.c.l.b16 %v60
  %v170 = vunpack.c.h.b16 %v60
  %v171 = vpack.c.b16 %v157, %v155
  %v172 = vpack.c.b16 %v158, %v156
  %v173 = vpack.c.b16 %v161, %v159
  %v174 = vpack.c.b16 %v162, %v160
  %v175 = vpack.c.b16 %v165, %v163
  %v176 = vpack.c.b16 %v166, %v164
  %v177 = vpack.c.b16 %v169, %v167
  %v178 = vpack.c.b16 %v170, %v168
  %vm187 = vcmask 523264
  %v189 = vsel %vm187, %v131, 0
  %v192 = vsel %vm187, %v132, 0
  %v195 = vsel %vm187, %v133, 0
  %v198 = vsel %vm187, %v134, 0
  %v201 = vsel %vm187, %v135, 0
  %v204 = vsel %vm187, %v136, 0
  %v207 = vsel %vm187, %v137, 0
  %v210 = vsel %vm187, %v138, 0
  %v213 = vsel %vm187, %v139, 0
  %v216 = vsel %vm187, %v140, 0
  %v219 = vsel %vm187, %v141, 0
  %v222 = vsel %vm187, %v142, 0
  %v225 = vsel %vm187, %v143, 0
  %v228 = vsel %vm187, %v144, 0
  %v231 = vsel %vm187, %v145, 0
  %v234 = vsel %vm187, %v146, 0
  %236 = vmatpush.bf16.msra.mxu0 0
  %237 = vmatpush.bf16.msra.mxu0 0
  %238 = vmatpush.bf16.msra.mxu0 0
  %239 = vmatpush.bf16.msra.mxu0 0
  %240 = vmatpush.bf16.msra.mxu0 %v177
  %241 = vmatpush.bf16.msra.mxu0 %v175
  %242 = vmatpush.bf16.msra.mxu0 %v173
  %243 = vmatpush.bf16.msra.mxu0 %v171
  %244 = vmatmul.bf16.gmra.mxu0 %v189
  %v245 = vpop.f32.mrf.mxu0
  %v246 = vadd.f32 %v63, %v245
  %v247 = vpop.f32.mrf.mxu0
  %v248 = vadd.f32 %v63, %v247
  %249 = vmatmul.bf16.gmra.mxu0 %v192
  %v250 = vpop.f32.mrf.mxu0
  %v251 = vadd.f32 %v63, %v250
  %v252 = vpop.f32.mrf.mxu0
  %v253 = vadd.f32 %v63, %v252
  %254 = vmatmul.bf16.gmra.mxu0 %v195
  %v255 = vpop.f32.mrf.mxu0
  %v256 = vadd.f32 %v63, %v255
  %v257 = vpop.f32.mrf.mxu0
  %v258 = vadd.f32 %v63, %v257
  %259 = vmatmul.bf16.gmra.mxu0 %v198
  %v260 = vpop.f32.mrf.mxu0
  %v261 = vadd.f32 %v63, %v260
  %v262 = vpop.f32.mrf.mxu0
  %v263 = vadd.f32 %v63, %v262
  %264 = vmatmul.bf16.gmra.mxu0 %v201
  %v265 = vpop.f32.mrf.mxu0
  %v266 = vadd.f32 %v63, %v265
  %v267 = vpop.f32.mrf.mxu0
  %v268 = vadd.f32 %v63, %v267
  %269 = vmatmul.bf16.gmra.mxu0 %v204
  %v270 = vpop.f32.mrf.mxu0
  %v271 = vadd.f32 %v63, %v270
  %v272 = vpop.f32.mrf.mxu0
  %v273 = vadd.f32 %v63, %v272
  %274 = vmatmul.bf16.gmra.mxu0 %v207
  %v275 = vpop.f32.mrf.mxu0
  %v276 = vadd.f32 %v63, %v275
  %v277 = vpop.f32.mrf.mxu0
  %v278 = vadd.f32 %v63, %v277
  %279 = vmatmul.bf16.gmra.mxu0 %v210
  %v280 = vpop.f32.mrf.mxu0
  %v281 = vadd.f32 %v63, %v280
  %v282 = vpop.f32.mrf.mxu0
  %v283 = vadd.f32 %v63, %v282
  %284 = vmatmul.bf16.gmra.mxu0 %v213
  %v285 = vpop.f32.mrf.mxu0
  %v286 = vadd.f32 %v63, %v285
  %v287 = vpop.f32.mrf.mxu0
  %v288 = vadd.f32 %v63, %v287
  %289 = vmatmul.bf16.gmra.mxu0 %v216
  %v290 = vpop.f32.mrf.mxu0
  %v291 = vadd.f32 %v63, %v290
  %v292 = vpop.f32.mrf.mxu0
  %v293 = vadd.f32 %v63, %v292
  %294 = vmatmul.bf16.gmra.mxu0 %v219
  %v295 = vpop.f32.mrf.mxu0
  %v296 = vadd.f32 %v63, %v295
  %v297 = vpop.f32.mrf.mxu0
  %v298 = vadd.f32 %v63, %v297
  %299 = vmatmul.bf16.gmra.mxu0 %v222
  %v300 = vpop.f32.mrf.mxu0
  %v301 = vadd.f32 %v63, %v300
  %v302 = vpop.f32.mrf.mxu0
  %v303 = vadd.f32 %v63, %v302
  %304 = vmatmul.bf16.gmra.mxu0 %v225
  %v305 = vpop.f32.mrf.mxu0
  %v306 = vadd.f32 %v63, %v305
  %v307 = vpop.f32.mrf.mxu0
  %v308 = vadd.f32 %v63, %v307
  %309 = vmatmul.bf16.gmra.mxu0 %v228
  %v310 = vpop.f32.mrf.mxu0
  %v311 = vadd.f32 %v63, %v310
  %v312 = vpop.f32.mrf.mxu0
  %v313 = vadd.f32 %v63, %v312
  %314 = vmatmul.bf16.gmra.mxu0 %v231
  %v315 = vpop.f32.mrf.mxu0
  %v316 = vadd.f32 %v63, %v315
  %v317 = vpop.f32.mrf.mxu0
  %v318 = vadd.f32 %v63, %v317
  %319 = vmatmul.bf16.gmra.mxu0 %v234
  %v320 = vpop.f32.mrf.mxu0
  %v321 = vadd.f32 %v63, %v320
  %v322 = vpop.f32.mrf.mxu0
  %v323 = vadd.f32 %v63, %v322
  %324 = vdwg.mxu0
  %325 = vmatpush.bf16.msra.mxu0 0
  %326 = vmatpush.bf16.msra.mxu0 0
  %327 = vmatpush.bf16.msra.mxu0 0
  %328 = vmatpush.bf16.msra.mxu0 0
  %329 = vmatpush.bf16.msra.mxu0 %v178
  %330 = vmatpush.bf16.msra.mxu0 %v176
  %331 = vmatpush.bf16.msra.mxu0 %v174
  %332 = vmatpush.bf16.msra.mxu0 %v172
  %333 = vmatmul.bf16.gmra.mxu0 %v189
  %v334 = vpop.f32.mrf.mxu0
  %v335 = vadd.f32 %v64, %v334
  %v336 = vpop.f32.mrf.mxu0
  %v337 = vadd.f32 %v64, %v336
  %338 = vmatmul.bf16.gmra.mxu0 %v192
  %v339 = vpop.f32.mrf.mxu0
  %v340 = vadd.f32 %v64, %v339
  %v341 = vpop.f32.mrf.mxu0
  %v342 = vadd.f32 %v64, %v341
  %343 = vmatmul.bf16.gmra.mxu0 %v195
  %v344 = vpop.f32.mrf.mxu0
  %v345 = vadd.f32 %v64, %v344
  %v346 = vpop.f32.mrf.mxu0
  %v347 = vadd.f32 %v64, %v346
  %348 = vmatmul.bf16.gmra.mxu0 %v198
  %v349 = vpop.f32.mrf.mxu0
  %v350 = vadd.f32 %v64, %v349
  %v351 = vpop.f32.mrf.mxu0
  %v352 = vadd.f32 %v64, %v351
  %353 = vmatmul.bf16.gmra.mxu0 %v201
  %v354 = vpop.f32.mrf.mxu0
  %v355 = vadd.f32 %v64, %v354
  %v356 = vpop.f32.mrf.mxu0
  %v357 = vadd.f32 %v64, %v356
  %358 = vmatmul.bf16.gmra.mxu0 %v204
  %v359 = vpop.f32.mrf.mxu0
  %v360 = vadd.f32 %v64, %v359
  %v361 = vpop.f32.mrf.mxu0
  %v362 = vadd.f32 %v64, %v361
  %363 = vmatmul.bf16.gmra.mxu0 %v207
  %v364 = vpop.f32.mrf.mxu0
  %v365 = vadd.f32 %v64, %v364
  %v366 = vpop.f32.mrf.mxu0
  %v367 = vadd.f32 %v64, %v366
  %368 = vmatmul.bf16.gmra.mxu0 %v210
  %v369 = vpop.f32.mrf.mxu0
  %v370 = vadd.f32 %v64, %v369
  %v371 = vpop.f32.mrf.mxu0
  %v372 = vadd.f32 %v64, %v371
  %373 = vmatmul.bf16.gmra.mxu0 %v213
  %v374 = vpop.f32.mrf.mxu0
  %v375 = vadd.f32 %v64, %v374
  %v376 = vpop.f32.mrf.mxu0
  %v377 = vadd.f32 %v64, %v376
  %378 = vmatmul.bf16.gmra.mxu0 %v216
  %v379 = vpop.f32.mrf.mxu0
  %v380 = vadd.f32 %v64, %v379
  %v381 = vpop.f32.mrf.mxu0
  %v382 = vadd.f32 %v64, %v381
  %383 = vmatmul.bf16.gmra.mxu0 %v219
  %v384 = vpop.f32.mrf.mxu0
  %v385 = vadd.f32 %v64, %v384
  %v386 = vpop.f32.mrf.mxu0
  %v387 = vadd.f32 %v64, %v386
  %388 = vmatmul.bf16.gmra.mxu0 %v222
  %v389 = vpop.f32.mrf.mxu0
  %v390 = vadd.f32 %v64, %v389
  %v391 = vpop.f32.mrf.mxu0
  %v392 = vadd.f32 %v64, %v391
  %393 = vmatmul.bf16.gmra.mxu0 %v225
  %v394 = vpop.f32.mrf.mxu0
  %v395 = vadd.f32 %v64, %v394
  %v396 = vpop.f32.mrf.mxu0
  %v397 = vadd.f32 %v64, %v396
  %398 = vmatmul.bf16.gmra.mxu0 %v228
  %v399 = vpop.f32.mrf.mxu0
  %v400 = vadd.f32 %v64, %v399
  %v401 = vpop.f32.mrf.mxu0
  %v402 = vadd.f32 %v64, %v401
  %403 = vmatmul.bf16.gmra.mxu0 %v231
  %v404 = vpop.f32.mrf.mxu0
  %v405 = vadd.f32 %v64, %v404
  %v406 = vpop.f32.mrf.mxu0
  %v407 = vadd.f32 %v64, %v406
  %408 = vmatmul.bf16.gmra.mxu0 %v234
  %v409 = vpop.f32.mrf.mxu0
  %v410 = vadd.f32 %v64, %v409
  %v411 = vpop.f32.mrf.mxu0
  %v412 = vadd.f32 %v64, %v411
  %413 = vdwg.mxu0
  %vm414 = vcmp.ge.f32.partialorder %v246, 0.0
  %vm415 = vcmp.ge.f32.partialorder %v335, 0.0
  %vm416 = vcmp.ge.f32.partialorder %v248, 0.0
  %vm417 = vcmp.ge.f32.partialorder %v337, 0.0
  %vm418 = vcmp.ge.f32.partialorder %v251, 0.0
  %vm419 = vcmp.ge.f32.partialorder %v340, 0.0
  %vm420 = vcmp.ge.f32.partialorder %v253, 0.0
  %vm421 = vcmp.ge.f32.partialorder %v342, 0.0
  %vm422 = vcmp.ge.f32.partialorder %v256, 0.0
  %vm423 = vcmp.ge.f32.partialorder %v345, 0.0
  %vm424 = vcmp.ge.f32.partialorder %v258, 0.0
  %vm425 = vcmp.ge.f32.partialorder %v347, 0.0
  %vm426 = vcmp.ge.f32.partialorder %v261, 0.0
  %vm427 = vcmp.ge.f32.partialorder %v350, 0.0
  %vm428 = vcmp.ge.f32.partialorder %v263, 0.0
  %vm429 = vcmp.ge.f32.partialorder %v352, 0.0
  %vm430 = vcmp.ge.f32.partialorder %v266, 0.0
  %vm431 = vcmp.ge.f32.partialorder %v355, 0.0
  %vm432 = vcmp.ge.f32.partialorder %v268, 0.0
  %vm433 = vcmp.ge.f32.partialorder %v357, 0.0
  %vm434 = vcmp.ge.f32.partialorder %v271, 0.0
  %vm435 = vcmp.ge.f32.partialorder %v360, 0.0
  %vm436 = vcmp.ge.f32.partialorder %v273, 0.0
  %vm437 = vcmp.ge.f32.partialorder %v362, 0.0
  %vm438 = vcmp.ge.f32.partialorder %v276, 0.0
  %vm439 = vcmp.ge.f32.partialorder %v365, 0.0
  %vm440 = vcmp.ge.f32.partialorder %v278, 0.0
  %vm441 = vcmp.ge.f32.partialorder %v367, 0.0
  %vm442 = vcmp.ge.f32.partialorder %v281, 0.0
  %vm443 = vcmp.ge.f32.partialorder %v370, 0.0
  %vm444 = vcmp.ge.f32.partialorder %v283, 0.0
  %vm445 = vcmp.ge.f32.partialorder %v372, 0.0
  %vm446 = vcmp.ge.f32.partialorder %v286, 0.0
  %vm447 = vcmp.ge.f32.partialorder %v375, 0.0
  %vm448 = vcmp.ge.f32.partialorder %v288, 0.0
  %vm449 = vcmp.ge.f32.partialorder %v377, 0.0
  %vm450 = vcmp.ge.f32.partialorder %v291, 0.0
  %vm451 = vcmp.ge.f32.partialorder %v380, 0.0
  %vm452 = vcmp.ge.f32.partialorder %v293, 0.0
  %vm453 = vcmp.ge.f32.partialorder %v382, 0.0
  %vm454 = vcmp.ge.f32.partialorder %v296, 0.0
  %vm455 = vcmp.ge.f32.partialorder %v385, 0.0
  %vm456 = vcmp.ge.f32.partialorder %v298, 0.0
  %vm457 = vcmp.ge.f32.partialorder %v387, 0.0
  %vm458 = vcmp.ge.f32.partialorder %v301, 0.0
  %vm459 = vcmp.ge.f32.partialorder %v390, 0.0
  %vm460 = vcmp.ge.f32.partialorder %v303, 0.0
  %vm461 = vcmp.ge.f32.partialorder %v392, 0.0
  %vm462 = vcmp.ge.f32.partialorder %v306, 0.0
  %vm463 = vcmp.ge.f32.partialorder %v395, 0.0
  %vm464 = vcmp.ge.f32.partialorder %v308, 0.0
  %vm465 = vcmp.ge.f32.partialorder %v397, 0.0
  %vm466 = vcmp.ge.f32.partialorder %v311, 0.0
  %vm467 = vcmp.ge.f32.partialorder %v400, 0.0
  %vm468 = vcmp.ge.f32.partialorder %v313, 0.0
  %vm469 = vcmp.ge.f32.partialorder %v402, 0.0
  %vm470 = vcmp.ge.f32.partialorder %v316, 0.0
  %vm471 = vcmp.ge.f32.partialorder %v405, 0.0
  %vm472 = vcmp.ge.f32.partialorder %v318, 0.0
  %vm473 = vcmp.ge.f32.partialorder %v407, 0.0
  %vm474 = vcmp.ge.f32.partialorder %v321, 0.0
  %vm475 = vcmp.ge.f32.partialorder %v410, 0.0
  %vm476 = vcmp.ge.f32.partialorder %v323, 0.0
  %vm477 = vcmp.ge.f32.partialorder %v412, 0.0
  %v478 = vmul.f32 %v246, 0.1
  %v479 = vmul.f32 %v335, 0.1
  %v480 = vmul.f32 %v248, 0.1
  %v481 = vmul.f32 %v337, 0.1
  %v482 = vmul.f32 %v251, 0.1
  %v483 = vmul.f32 %v340, 0.1
  %v484 = vmul.f32 %v253, 0.1
  %v485 = vmul.f32 %v342, 0.1
  %v486 = vmul.f32 %v256, 0.1
  %v487 = vmul.f32 %v345, 0.1
  %v488 = vmul.f32 %v258, 0.1
  %v489 = vmul.f32 %v347, 0.1
  %v490 = vmul.f32 %v261, 0.1
  %v491 = vmul.f32 %v350, 0.1
  %v492 = vmul.f32 %v263, 0.1
  %v493 = vmul.f32 %v352, 0.1
  %v494 = vmul.f32 %v266, 0.1
  %v495 = vmul.f32 %v355, 0.1
  %v496 = vmul.f32 %v268, 0.1
  %v497 = vmul.f32 %v357, 0.1
  %v498 = vmul.f32 %v271, 0.1
  %v499 = vmul.f32 %v360, 0.1
  %v500 = vmul.f32 %v273, 0.1
  %v501 = vmul.f32 %v362, 0.1
  %v502 = vmul.f32 %v276, 0.1
  %v503 = vmul.f32 %v365, 0.1
  %v504 = vmul.f32 %v278, 0.1
  %v505 = vmul.f32 %v367, 0.1
  %v506 = vmul.f32 %v281, 0.1
  %v507 = vmul.f32 %v370, 0.1
  %v508 = vmul.f32 %v283, 0.1
  %v509 = vmul.f32 %v372, 0.1
  %v510 = vmul.f32 %v286, 0.1
  %v511 = vmul.f32 %v375, 0.1
  %v512 = vmul.f32 %v288, 0.1
  %v513 = vmul.f32 %v377, 0.1
  %v514 = vmul.f32 %v291, 0.1
  %v515 = vmul.f32 %v380, 0.1
  %v516 = vmul.f32 %v293, 0.1
  %v517 = vmul.f32 %v382, 0.1
  %v518 = vmul.f32 %v296, 0.1
  %v519 = vmul.f32 %v385, 0.1
  %v520 = vmul.f32 %v298, 0.1
  %v521 = vmul.f32 %v387, 0.1
  %v522 = vmul.f32 %v301, 0.1
  %v523 = vmul.f32 %v390, 0.1
  %v524 = vmul.f32 %v303, 0.1
  %v525 = vmul.f32 %v392, 0.1
  %v526 = vmul.f32 %v306, 0.1
  %v527 = vmul.f32 %v395, 0.1
  %v528 = vmul.f32 %v308, 0.1
  %v529 = vmul.f32 %v397, 0.1
  %v530 = vmul.f32 %v311, 0.1
  %v531 = vmul.f32 %v400, 0.1
  %v532 = vmul.f32 %v313, 0.1
  %v533 = vmul.f32 %v402, 0.1
  %v534 = vmul.f32 %v316, 0.1
  %v535 = vmul.f32 %v405, 0.1
  %v536 = vmul.f32 %v318, 0.1
  %v537 = vmul.f32 %v407, 0.1
  %v538 = vmul.f32 %v321, 0.1
  %v539 = vmul.f32 %v410, 0.1
  %v540 = vmul.f32 %v323, 0.1
  %v541 = vmul.f32 %v412, 0.1
  %v542 = vsel %vm414, %v246, %v478
  %v543 = vsel %vm415, %v335, %v479
  %v544 = vsel %vm416, %v248, %v480
  %v545 = vsel %vm417, %v337, %v481
  %v546 = vsel %vm418, %v251, %v482
  %v547 = vsel %vm419, %v340, %v483
  %v548 = vsel %vm420, %v253, %v484
  %v549 = vsel %vm421, %v342, %v485
  %v550 = vsel %vm422, %v256, %v486
  %v551 = vsel %vm423, %v345, %v487
  %v552 = vsel %vm424, %v258, %v488
  %v553 = vsel %vm425, %v347, %v489
  %v554 = vsel %vm426, %v261, %v490
  %v555 = vsel %vm427, %v350, %v491
  %v556 = vsel %vm428, %v263, %v492
  %v557 = vsel %vm429, %v352, %v493
  %v558 = vsel %vm430, %v266, %v494
  %v559 = vsel %vm431, %v355, %v495
  %v560 = vsel %vm432, %v268, %v496
  %v561 = vsel %vm433, %v357, %v497
  %v562 = vsel %vm434, %v271, %v498
  %v563 = vsel %vm435, %v360, %v499
  %v564 = vsel %vm436, %v273, %v500
  %v565 = vsel %vm437, %v362, %v501
  %v566 = vsel %vm438, %v276, %v502
  %v567 = vsel %vm439, %v365, %v503
  %v568 = vsel %vm440, %v278, %v504
  %v569 = vsel %vm441, %v367, %v505
  %v570 = vsel %vm442, %v281, %v506
  %v571 = vsel %vm443, %v370, %v507
  %v572 = vsel %vm444, %v283, %v508
  %v573 = vsel %vm445, %v372, %v509
  %v574 = vsel %vm446, %v286, %v510
  %v575 = vsel %vm447, %v375, %v511
  %v576 = vsel %vm448, %v288, %v512
  %v577 = vsel %vm449, %v377, %v513
  %v578 = vsel %vm450, %v291, %v514
  %v579 = vsel %vm451, %v380, %v515
  %v580 = vsel %vm452, %v293, %v516
  %v581 = vsel %vm453, %v382, %v517
  %v582 = vsel %vm454, %v296, %v518
  %v583 = vsel %vm455, %v385, %v519
  %v584 = vsel %vm456, %v298, %v520
  %v585 = vsel %vm457, %v387, %v521
  %v586 = vsel %vm458, %v301, %v522
  %v587 = vsel %vm459, %v390, %v523
  %v588 = vsel %vm460, %v303, %v524
  %v589 = vsel %vm461, %v392, %v525
  %v590 = vsel %vm462, %v306, %v526
  %v591 = vsel %vm463, %v395, %v527
  %v592 = vsel %vm464, %v308, %v528
  %v593 = vsel %vm465, %v397, %v529
  %v594 = vsel %vm466, %v311, %v530
  %v595 = vsel %vm467, %v400, %v531
  %v596 = vsel %vm468, %v313, %v532
  %v597 = vsel %vm469, %v402, %v533
  %v598 = vsel %vm470, %v316, %v534
  %v599 = vsel %vm471, %v405, %v535
  %v600 = vsel %vm472, %v318, %v536
  %v601 = vsel %vm473, %v407, %v537
  %v602 = vsel %vm474, %v321, %v538
  %v603 = vsel %vm475, %v410, %v539
  %v604 = vsel %vm476, %v323, %v540
  %v605 = vsel %vm477, %v412, %v541
  %v606 = vpack.c.bf16 %v544, %v542
  %v607 = vpack.c.bf16 %v545, %v543
  %v608 = vpack.c.bf16 %v548, %v546
  %v609 = vpack.c.bf16 %v549, %v547
  %v610 = vpack.c.bf16 %v552, %v550
  %v611 = vpack.c.bf16 %v553, %v551
  %v612 = vpack.c.bf16 %v556, %v554
  %v613 = vpack.c.bf16 %v557, %v555
  %v614 = vpack.c.bf16 %v560, %v558
  %v615 = vpack.c.bf16 %v561, %v559
  %v616 = vpack.c.bf16 %v564, %v562
  %v617 = vpack.c.bf16 %v565, %v563
  %v618 = vpack.c.bf16 %v568, %v566
  %v619 = vpack.c.bf16 %v569, %v567
  %v620 = vpack.c.bf16 %v572, %v570
  %v621 = vpack.c.bf16 %v573, %v571
  %v622 = vpack.c.bf16 %v576, %v574
  %v623 = vpack.c.bf16 %v577, %v575
  %v624 = vpack.c.bf16 %v580, %v578
  %v625 = vpack.c.bf16 %v581, %v579
  %v626 = vpack.c.bf16 %v584, %v582
  %v627 = vpack.c.bf16 %v585, %v583
  %v628 = vpack.c.bf16 %v588, %v586
  %v629 = vpack.c.bf16 %v589, %v587
  %v630 = vpack.c.bf16 %v592, %v590
  %v631 = vpack.c.bf16 %v593, %v591
  %v632 = vpack.c.bf16 %v596, %v594
  %v633 = vpack.c.bf16 %v597, %v595
  %v634 = vpack.c.bf16 %v600, %v598
  %v635 = vpack.c.bf16 %v601, %v599
  %v636 = vpack.c.bf16 %v604, %v602
  %v637 = vpack.c.bf16 %v605, %v603
  %v638 = vld [vmem:[%s3] sm:$0xff]
  %v639 = vld [vmem:[%s3 + $0x8] sm:$0xff]
  %v640 = vld [vmem:[%s3 + $0x10] sm:$0xff]
  %v641 = vld [vmem:[%s3 + $0x18] sm:$0xf]
  %v642 = vld [vmem:[%s3 + $0x1c] sm:$0xff]
  %v643 = vld [vmem:[%s3 + $0x24] sm:$0xff]
  %v644 = vld [vmem:[%s3 + $0x2c] sm:$0xff]
  %v645 = vld [vmem:[%s3 + $0x34] sm:$0xf]
  %v646 = vld [vmem:[%s3 + $0x38] sm:$0xff]
  %v647 = vld [vmem:[%s3 + $0x40] sm:$0xff]
  %v648 = vld [vmem:[%s3 + $0x48] sm:$0xff]
  %v649 = vld [vmem:[%s3 + $0x50] sm:$0xf]
  %v650 = vld [vmem:[%s3 + $0x54] sm:$0xff]
  %v651 = vld [vmem:[%s3 + $0x5c] sm:$0xff]
  %v652 = vld [vmem:[%s3 + $0x64] sm:$0xff]
  %v653 = vld [vmem:[%s3 + $0x6c] sm:$0xf]
  %v654 = vld [vmem:[%s3 + $0x70] sm:$0xff]
  %v655 = vld [vmem:[%s3 + $0x78] sm:$0xff]
  %v656 = vld [vmem:[%s3 + $0x80] sm:$0xff]
  %v657 = vld [vmem:[%s3 + $0x88] sm:$0xf]
  %v658 = vld [vmem:[%s3 + $0x8c] sm:$0xff]
  %v659 = vld [vmem:[%s3 + $0x94] sm:$0xff]
  %v660 = vld [vmem:[%s3 + $0x9c] sm:$0xff]
  %v661 = vld [vmem:[%s3 + $0xa4] sm:$0xf]
  %v662 = vld [vmem:[%s3 + $0xa8] sm:$0xff]
  %v663 = vld [vmem:[%s3 + $0xb0] sm:$0xff]
  %v664 = vld [vmem:[%s3 + $0xb8] sm:$0xff]
  %v665 = vld [vmem:[%s3 + $0xc0] sm:$0xf]
  %v666 = vld [vmem:[%s3 + $0xc4] sm:$0xff]
  %v667 = vld [vmem:[%s3 + $0xcc] sm:$0xff]
  %v668 = vld [vmem:[%s3 + $0xd4] sm:$0xff]
  %v669 = vld [vmem:[%s3 + $0xdc] sm:$0xf]
  %v670 = vld [vmem:[%s3 + $0xe0] sm:$0xff]
  %v671 = vld [vmem:[%s3 + $0xe8] sm:$0xff]
  %v672 = vld [vmem:[%s3 + $0xf0] sm:$0xff]
  %v673 = vld [vmem:[%s3 + $0xf8] sm:$0xf]
  %v674 = vld [vmem:[%s3 + $0xfc] sm:$0xff]
  %v675 = vld [vmem:[%s3 + $0x104] sm:$0xff]
  %v676 = vld [vmem:[%s3 + $0x10c] sm:$0xff]
  %v677 = vld [vmem:[%s3 + $0x114] sm:$0xf]
  %v678 = vld [vmem:[%s3 + $0x118] sm:$0xff]
  %v679 = vld [vmem:[%s3 + $0x120] sm:$0xff]
  %v680 = vld [vmem:[%s3 + $0x128] sm:$0xff]
  %v681 = vld [vmem:[%s3 + $0x130] sm:$0xf]
  %v682 = vld [vmem:[%s3 + $0x134] sm:$0xff]
  %v683 = vld [vmem:[%s3 + $0x13c] sm:$0xff]
  %v684 = vld [vmem:[%s3 + $0x144] sm:$0xff]
  %v685 = vld [vmem:[%s3 + $0x14c] sm:$0xf]
  %v686 = vld [vmem:[%s3 + $0x150] sm:$0xff]
  %v687 = vld [vmem:[%s3 + $0x158] sm:$0xff]
  %v688 = vld [vmem:[%s3 + $0x160] sm:$0xff]
  %v689 = vld [vmem:[%s3 + $0x168] sm:$0xf]
  %v690 = vld [vmem:[%s3 + $0x16c] sm:$0xff]
  %v691 = vld [vmem:[%s3 + $0x174] sm:$0xff]
  %v692 = vld [vmem:[%s3 + $0x17c] sm:$0xff]
  %v693 = vld [vmem:[%s3 + $0x184] sm:$0xf]
  %v694 = vld [vmem:[%s3 + $0x188] sm:$0xff]
  %v695 = vld [vmem:[%s3 + $0x190] sm:$0xff]
  %v696 = vld [vmem:[%s3 + $0x198] sm:$0xff]
  %v697 = vld [vmem:[%s3 + $0x1a0] sm:$0xf]
  %v698 = vld [vmem:[%s3 + $0x1a4] sm:$0xff]
  %v699 = vld [vmem:[%s3 + $0x1ac] sm:$0xff]
  %v700 = vld [vmem:[%s3 + $0x1b4] sm:$0xff]
  %v701 = vld [vmem:[%s3 + $0x1bc] sm:$0xf]
  %v702 = vld [vmem:[%s3 + $0x1c0] sm:$0xff]
  %v703 = vld [vmem:[%s3 + $0x1c8] sm:$0xff]
  %v704 = vld [vmem:[%s3 + $0x1d0] sm:$0xff]
  %v705 = vld [vmem:[%s3 + $0x1d8] sm:$0xf]
  %v706 = vld [vmem:[%s3 + $0x1dc] sm:$0xff]
  %v707 = vld [vmem:[%s3 + $0x1e4] sm:$0xff]
  %v708 = vld [vmem:[%s3 + $0x1ec] sm:$0xff]
  %v709 = vld [vmem:[%s3 + $0x1f4] sm:$0xf]
  %v710 = vld [vmem:[%s3 + $0x1f8] sm:$0xff]
  %v711 = vld [vmem:[%s3 + $0x200] sm:$0xff]
  %v712 = vld [vmem:[%s3 + $0x208] sm:$0xff]
  %v713 = vld [vmem:[%s3 + $0x210] sm:$0xf]
  %v714 = vld [vmem:[%s3 + $0x214] sm:$0xff]
  %v715 = vld [vmem:[%s3 + $0x21c] sm:$0xff]
  %v716 = vld [vmem:[%s3 + $0x224] sm:$0xff]
  %v717 = vld [vmem:[%s3 + $0x22c] sm:$0xf]
  %v718 = vld [vmem:[%s3 + $0x230] sm:$0xff]
  %v719 = vld [vmem:[%s3 + $0x238] sm:$0xff]
  %v720 = vld [vmem:[%s3 + $0x240] sm:$0xff]
  %v721 = vld [vmem:[%s3 + $0x248] sm:$0xf]
  %v722 = vld [vmem:[%s3 + $0x24c] sm:$0xff]
  %v723 = vld [vmem:[%s3 + $0x254] sm:$0xff]
  %v724 = vld [vmem:[%s3 + $0x25c] sm:$0xff]
  %v725 = vld [vmem:[%s3 + $0x264] sm:$0xf]
  %v726 = vld [vmem:[%s3 + $0x268] sm:$0xff]
  %v727 = vld [vmem:[%s3 + $0x270] sm:$0xff]
  %v728 = vld [vmem:[%s3 + $0x278] sm:$0xff]
  %v729 = vld [vmem:[%s3 + $0x280] sm:$0xf]
  %v730 = vld [vmem:[%s3 + $0x284] sm:$0xff]
  %v731 = vld [vmem:[%s3 + $0x28c] sm:$0xff]
  %v732 = vld [vmem:[%s3 + $0x294] sm:$0xff]
  %v733 = vld [vmem:[%s3 + $0x29c] sm:$0xf]
  %v734 = vld [vmem:[%s3 + $0x2a0] sm:$0xff]
  %v735 = vld [vmem:[%s3 + $0x2a8] sm:$0xff]
  %v736 = vld [vmem:[%s3 + $0x2b0] sm:$0xff]
  %v737 = vld [vmem:[%s3 + $0x2b8] sm:$0xf]
  %v738 = vld [vmem:[%s3 + $0x2bc] sm:$0xff]
  %v739 = vld [vmem:[%s3 + $0x2c4] sm:$0xff]
  %v740 = vld [vmem:[%s3 + $0x2cc] sm:$0xff]
  %v741 = vld [vmem:[%s3 + $0x2d4] sm:$0xf]
  %v742 = vld [vmem:[%s3 + $0x2d8] sm:$0xff]
  %v743 = vld [vmem:[%s3 + $0x2e0] sm:$0xff]
  %v744 = vld [vmem:[%s3 + $0x2e8] sm:$0xff]
  %v745 = vld [vmem:[%s3 + $0x2f0] sm:$0xf]
  %v746 = vld [vmem:[%s3 + $0x2f4] sm:$0xff]
  %v747 = vld [vmem:[%s3 + $0x2fc] sm:$0xff]
  %v748 = vld [vmem:[%s3 + $0x304] sm:$0xff]
  %v749 = vld [vmem:[%s3 + $0x30c] sm:$0xf]
  %v750 = vld [vmem:[%s3 + $0x310] sm:$0xff]
  %v751 = vld [vmem:[%s3 + $0x318] sm:$0xff]
  %v752 = vld [vmem:[%s3 + $0x320] sm:$0xff]
  %v753 = vld [vmem:[%s3 + $0x328] sm:$0xf]
  %v754 = vld [vmem:[%s3 + $0x32c] sm:$0xff]
  %v755 = vld [vmem:[%s3 + $0x334] sm:$0xff]
  %v756 = vld [vmem:[%s3 + $0x33c] sm:$0xff]
  %v757 = vld [vmem:[%s3 + $0x344] sm:$0xf]
  %v758 = vld [vmem:[%s3 + $0x348] sm:$0xff]
  %v759 = vld [vmem:[%s3 + $0x350] sm:$0xff]
  %v760 = vld [vmem:[%s3 + $0x358] sm:$0xff]
  %v761 = vld [vmem:[%s3 + $0x360] sm:$0xf]
  %v762 = vld [vmem:[%s3 + $0x364] sm:$0xff]
  %v763 = vld [vmem:[%s3 + $0x36c] sm:$0xff]
  %v764 = vld [vmem:[%s3 + $0x374] sm:$0xff]
  %v765 = vld [vmem:[%s3 + $0x37c] sm:$0xf]
  %v766 = vld [vmem:[%s4] sm:$0xff]
  %v768 = vperm.slane %v766, 0
  %v769 = vperm.slane %v766, 1
  %v770 = vperm.slane %v766, 2
  %v771 = vperm.slane %v766, 3
  %v772 = vperm.slane %v766, 4
  %v773 = vperm.slane %v766, 5
  %v774 = vperm.slane %v766, 6
  %v910 = vunpack.c.l.b16 %v638
  %v911 = vunpack.c.h.b16 %v638
  %v912 = vunpack.c.l.b16 %v639
  %v913 = vunpack.c.h.b16 %v639
  %v914 = vunpack.c.l.b16 %v640
  %v915 = vunpack.c.h.b16 %v640
  %v916 = vunpack.c.l.b16 %v641
  %v917 = vunpack.c.l.b16 %v642
  %v918 = vunpack.c.h.b16 %v642
  %v919 = vunpack.c.l.b16 %v643
  %v920 = vunpack.c.h.b16 %v643
  %v921 = vunpack.c.l.b16 %v644
  %v922 = vunpack.c.h.b16 %v644
  %v923 = vunpack.c.l.b16 %v645
  %v924 = vunpack.c.l.b16 %v646
  %v925 = vunpack.c.h.b16 %v646
  %v926 = vunpack.c.l.b16 %v647
  %v927 = vunpack.c.h.b16 %v647
  %v928 = vunpack.c.l.b16 %v648
  %v929 = vunpack.c.h.b16 %v648
  %v930 = vunpack.c.l.b16 %v649
  %v931 = vunpack.c.l.b16 %v650
  %v932 = vunpack.c.h.b16 %v650
  %v933 = vunpack.c.l.b16 %v651
  %v934 = vunpack.c.h.b16 %v651
  %v935 = vunpack.c.l.b16 %v652
  %v936 = vunpack.c.h.b16 %v652
  %v937 = vunpack.c.l.b16 %v653
  %v938 = vunpack.c.l.b16 %v654
  %v939 = vunpack.c.h.b16 %v654
  %v940 = vunpack.c.l.b16 %v655
  %v941 = vunpack.c.h.b16 %v655
  %v942 = vunpack.c.l.b16 %v656
  %v943 = vunpack.c.h.b16 %v656
  %v944 = vunpack.c.l.b16 %v657
  %v945 = vunpack.c.l.b16 %v658
  %v946 = vunpack.c.h.b16 %v658
  %v947 = vunpack.c.l.b16 %v659
  %v948 = vunpack.c.h.b16 %v659
  %v949 = vunpack.c.l.b16 %v660
  %v950 = vunpack.c.h.b16 %v660
  %v951 = vunpack.c.l.b16 %v661
  %v952 = vunpack.c.l.b16 %v662
  %v953 = vunpack.c.h.b16 %v662
  %v954 = vunpack.c.l.b16 %v663
  %v955 = vunpack.c.h.b16 %v663
  %v956 = vunpack.c.l.b16 %v664
  %v957 = vunpack.c.h.b16 %v664
  %v958 = vunpack.c.l.b16 %v665
  %v959 = vunpack.c.l.b16 %v666
  %v960 = vunpack.c.h.b16 %v666
  %v961 = vunpack.c.l.b16 %v667
  %v962 = vunpack.c.h.b16 %v667
  %v963 = vunpack.c.l.b16 %v668
  %v964 = vunpack.c.h.b16 %v668
  %v965 = vunpack.c.l.b16 %v669
  %v966 = vunpack.c.l.b16 %v670
  %v967 = vunpack.c.h.b16 %v670
  %v968 = vunpack.c.l.b16 %v671
  %v969 = vunpack.c.h.b16 %v671
  %v970 = vunpack.c.l.b16 %v672
  %v971 = vunpack.c.h.b16 %v672
  %v972 = vunpack.c.l.b16 %v673
  %v973 = vunpack.c.l.b16 %v674
  %v974 = vunpack.c.h.b16 %v674
  %v975 = vunpack.c.l.b16 %v675
  %v976 = vunpack.c.h.b16 %v675
  %v977 = vunpack.c.l.b16 %v676
  %v978 = vunpack.c.h.b16 %v676
  %v979 = vunpack.c.l.b16 %v677
  %v980 = vunpack.c.l.b16 %v678
  %v981 = vunpack.c.h.b16 %v678
  %v982 = vunpack.c.l.b16 %v679
  %v983 = vunpack.c.h.b16 %v679
  %v984 = vunpack.c.l.b16 %v680
  %v985 = vunpack.c.h.b16 %v680
  %v986 = vunpack.c.l.b16 %v681
  %v987 = vunpack.c.l.b16 %v682
  %v988 = vunpack.c.h.b16 %v682
  %v989 = vunpack.c.l.b16 %v683
  %v990 = vunpack.c.h.b16 %v683
  %v991 = vunpack.c.l.b16 %v684
  %v992 = vunpack.c.h.b16 %v684
  %v993 = vunpack.c.l.b16 %v685
  %v994 = vunpack.c.l.b16 %v686
  %v995 = vunpack.c.h.b16 %v686
  %v996 = vunpack.c.l.b16 %v687
  %v997 = vunpack.c.h.b16 %v687
  %v998 = vunpack.c.l.b16 %v688
  %v999 = vunpack.c.h.b16 %v688
  %v1000 = vunpack.c.l.b16 %v689
  %v1001 = vunpack.c.l.b16 %v690
  %v1002 = vunpack.c.h.b16 %v690
  %v1003 = vunpack.c.l.b16 %v691
  %v1004 = vunpack.c.h.b16 %v691
  %v1005 = vunpack.c.l.b16 %v692
  %v1006 = vunpack.c.h.b16 %v692
  %v1007 = vunpack.c.l.b16 %v693
  %v1008 = vunpack.c.l.b16 %v694
  %v1009 = vunpack.c.h.b16 %v694
  %v1010 = vunpack.c.l.b16 %v695
  %v1011 = vunpack.c.h.b16 %v695
  %v1012 = vunpack.c.l.b16 %v696
  %v1013 = vunpack.c.h.b16 %v696
  %v1014 = vunpack.c.l.b16 %v697
  %v1015 = vunpack.c.l.b16 %v698
  %v1016 = vunpack.c.h.b16 %v698
  %v1017 = vunpack.c.l.b16 %v699
  %v1018 = vunpack.c.h.b16 %v699
  %v1019 = vunpack.c.l.b16 %v700
  %v1020 = vunpack.c.h.b16 %v700
  %v1021 = vunpack.c.l.b16 %v701
  %v1022 = vunpack.c.l.b16 %v702
  %v1023 = vunpack.c.h.b16 %v702
  %v1024 = vunpack.c.l.b16 %v703
  %v1025 = vunpack.c.h.b16 %v703
  %v1026 = vunpack.c.l.b16 %v704
  %v1027 = vunpack.c.h.b16 %v704
  %v1028 = vunpack.c.l.b16 %v705
  %v1029 = vunpack.c.l.b16 %v706
  %v1030 = vunpack.c.h.b16 %v706
  %v1031 = vunpack.c.l.b16 %v707
  %v1032 = vunpack.c.h.b16 %v707
  %v1033 = vunpack.c.l.b16 %v708
  %v1034 = vunpack.c.h.b16 %v708
  %v1035 = vunpack.c.l.b16 %v709
  %v1036 = vunpack.c.l.b16 %v710
  %v1037 = vunpack.c.h.b16 %v710
  %v1038 = vunpack.c.l.b16 %v711
  %v1039 = vunpack.c.h.b16 %v711
  %v1040 = vunpack.c.l.b16 %v712
  %v1041 = vunpack.c.h.b16 %v712
  %v1042 = vunpack.c.l.b16 %v713
  %v1043 = vunpack.c.l.b16 %v714
  %v1044 = vunpack.c.h.b16 %v714
  %v1045 = vunpack.c.l.b16 %v715
  %v1046 = vunpack.c.h.b16 %v715
  %v1047 = vunpack.c.l.b16 %v716
  %v1048 = vunpack.c.h.b16 %v716
  %v1049 = vunpack.c.l.b16 %v717
  %v1050 = vunpack.c.l.b16 %v718
  %v1051 = vunpack.c.h.b16 %v718
  %v1052 = vunpack.c.l.b16 %v719
  %v1053 = vunpack.c.h.b16 %v719
  %v1054 = vunpack.c.l.b16 %v720
  %v1055 = vunpack.c.h.b16 %v720
  %v1056 = vunpack.c.l.b16 %v721
  %v1057 = vunpack.c.l.b16 %v722
  %v1058 = vunpack.c.h.b16 %v722
  %v1059 = vunpack.c.l.b16 %v723
  %v1060 = vunpack.c.h.b16 %v723
  %v1061 = vunpack.c.l.b16 %v724
  %v1062 = vunpack.c.h.b16 %v724
  %v1063 = vunpack.c.l.b16 %v725
  %v1064 = vunpack.c.l.b16 %v726
  %v1065 = vunpack.c.h.b16 %v726
  %v1066 = vunpack.c.l.b16 %v727
  %v1067 = vunpack.c.h.b16 %v727
  %v1068 = vunpack.c.l.b16 %v728
  %v1069 = vunpack.c.h.b16 %v728
  %v1070 = vunpack.c.l.b16 %v729
  %v1071 = vunpack.c.l.b16 %v730
  %v1072 = vunpack.c.h.b16 %v730
  %v1073 = vunpack.c.l.b16 %v731
  %v1074 = vunpack.c.h.b16 %v731
  %v1075 = vunpack.c.l.b16 %v732
  %v1076 = vunpack.c.h.b16 %v732
  %v1077 = vunpack.c.l.b16 %v733
  %v1078 = vunpack.c.l.b16 %v734
  %v1079 = vunpack.c.h.b16 %v734
  %v1080 = vunpack.c.l.b16 %v735
  %v1081 = vunpack.c.h.b16 %v735
  %v1082 = vunpack.c.l.b16 %v736
  %v1083 = vunpack.c.h.b16 %v736
  %v1084 = vunpack.c.l.b16 %v737
  %v1085 = vunpack.c.l.b16 %v738
  %v1086 = vunpack.c.h.b16 %v738
  %v1087 = vunpack.c.l.b16 %v739
  %v1088 = vunpack.c.h.b16 %v739
  %v1089 = vunpack.c.l.b16 %v740
  %v1090 = vunpack.c.h.b16 %v740
  %v1091 = vunpack.c.l.b16 %v741
  %v1092 = vunpack.c.l.b16 %v742
  %v1093 = vunpack.c.h.b16 %v742
  %v1094 = vunpack.c.l.b16 %v743
  %v1095 = vunpack.c.h.b16 %v743
  %v1096 = vunpack.c.l.b16 %v744
  %v1097 = vunpack.c.h.b16 %v744
  %v1098 = vunpack.c.l.b16 %v745
  %v1099 = vunpack.c.l.b16 %v746
  %v1100 = vunpack.c.h.b16 %v746
  %v1101 = vunpack.c.l.b16 %v747
  %v1102 = vunpack.c.h.b16 %v747
  %v1103 = vunpack.c.l.b16 %v748
  %v1104 = vunpack.c.h.b16 %v748
  %v1105 = vunpack.c.l.b16 %v749
  %v1106 = vunpack.c.l.b16 %v750
  %v1107 = vunpack.c.h.b16 %v750
  %v1108 = vunpack.c.l.b16 %v751
  %v1109 = vunpack.c.h.b16 %v751
  %v1110 = vunpack.c.l.b16 %v752
  %v1111 = vunpack.c.h.b16 %v752
  %v1112 = vunpack.c.l.b16 %v753
  %v1113 = vunpack.c.l.b16 %v754
  %v1114 = vunpack.c.h.b16 %v754
  %v1115 = vunpack.c.l.b16 %v755
  %v1116 = vunpack.c.h.b16 %v755
  %v1117 = vunpack.c.l.b16 %v756
  %v1118 = vunpack.c.h.b16 %v756
  %v1119 = vunpack.c.l.b16 %v757
  %v1120 = vunpack.c.l.b16 %v758
  %v1121 = vunpack.c.h.b16 %v758
  %v1122 = vunpack.c.l.b16 %v759
  %v1123 = vunpack.c.h.b16 %v759
  %v1124 = vunpack.c.l.b16 %v760
  %v1125 = vunpack.c.h.b16 %v760
  %v1126 = vunpack.c.l.b16 %v761
  %v1127 = vunpack.c.l.b16 %v762
  %v1128 = vunpack.c.h.b16 %v762
  %v1129 = vunpack.c.l.b16 %v763
  %v1130 = vunpack.c.h.b16 %v763
  %v1131 = vunpack.c.l.b16 %v764
  %v1132 = vunpack.c.h.b16 %v764
  %v1133 = vunpack.c.l.b16 %v765
  %v1134 = vpack.c.b16 %v917, %v910
  %v1135 = vpack.c.b16 %v918, %v911
  %v1136 = vpack.c.b16 %v919, %v912
  %v1137 = vpack.c.b16 %v920, %v913
  %v1138 = vpack.c.b16 %v921, %v914
  %v1139 = vpack.c.b16 %v922, %v915
  %v1140 = vpack.c.b16 %v923, %v916
  %v1141 = vpack.c.b16 %v931, %v924
  %v1142 = vpack.c.b16 %v932, %v925
  %v1143 = vpack.c.b16 %v933, %v926
  %v1144 = vpack.c.b16 %v934, %v927
  %v1145 = vpack.c.b16 %v935, %v928
  %v1146 = vpack.c.b16 %v936, %v929
  %v1147 = vpack.c.b16 %v937, %v930
  %v1148 = vpack.c.b16 %v945, %v938
  %v1149 = vpack.c.b16 %v946, %v939
  %v1150 = vpack.c.b16 %v947, %v940
  %v1151 = vpack.c.b16 %v948, %v941
  %v1152 = vpack.c.b16 %v949, %v942
  %v1153 = vpack.c.b16 %v950, %v943
  %v1154 = vpack.c.b16 %v951, %v944
  %v1155 = vpack.c.b16 %v959, %v952
  %v1156 = vpack.c.b16 %v960, %v953
  %v1157 = vpack.c.b16 %v961, %v954
  %v1158 = vpack.c.b16 %v962, %v955
  %v1159 = vpack.c.b16 %v963, %v956
  %v1160 = vpack.c.b16 %v964, %v957
  %v1161 = vpack.c.b16 %v965, %v958
  %v1162 = vpack.c.b16 %v973, %v966
  %v1163 = vpack.c.b16 %v974, %v967
  %v1164 = vpack.c.b16 %v975, %v968
  %v1165 = vpack.c.b16 %v976, %v969
  %v1166 = vpack.c.b16 %v977, %v970
  %v1167 = vpack.c.b16 %v978, %v971
  %v1168 = vpack.c.b16 %v979, %v972
  %v1169 = vpack.c.b16 %v987, %v980
  %v1170 = vpack.c.b16 %v988, %v981
  %v1171 = vpack.c.b16 %v989, %v982
  %v1172 = vpack.c.b16 %v990, %v983
  %v1173 = vpack.c.b16 %v991, %v984
  %v1174 = vpack.c.b16 %v992, %v985
  %v1175 = vpack.c.b16 %v993, %v986
  %v1176 = vpack.c.b16 %v1001, %v994
  %v1177 = vpack.c.b16 %v1002, %v995
  %v1178 = vpack.c.b16 %v1003, %v996
  %v1179 = vpack.c.b16 %v1004, %v997
  %v1180 = vpack.c.b16 %v1005, %v998
  %v1181 = vpack.c.b16 %v1006, %v999
  %v1182 = vpack.c.b16 %v1007, %v1000
  %v1183 = vpack.c.b16 %v1015, %v1008
  %v1184 = vpack.c.b16 %v1016, %v1009
  %v1185 = vpack.c.b16 %v1017, %v1010
  %v1186 = vpack.c.b16 %v1018, %v1011
  %v1187 = vpack.c.b16 %v1019, %v1012
  %v1188 = vpack.c.b16 %v1020, %v1013
  %v1189 = vpack.c.b16 %v1021, %v1014
  %v1190 = vpack.c.b16 %v1029, %v1022
  %v1191 = vpack.c.b16 %v1030, %v1023
  %v1192 = vpack.c.b16 %v1031, %v1024
  %v1193 = vpack.c.b16 %v1032, %v1025
  %v1194 = vpack.c.b16 %v1033, %v1026
  %v1195 = vpack.c.b16 %v1034, %v1027
  %v1196 = vpack.c.b16 %v1035, %v1028
  %v1197 = vpack.c.b16 %v1043, %v1036
  %v1198 = vpack.c.b16 %v1044, %v1037
  %v1199 = vpack.c.b16 %v1045, %v1038
  %v1200 = vpack.c.b16 %v1046, %v1039
  %v1201 = vpack.c.b16 %v1047, %v1040
  %v1202 = vpack.c.b16 %v1048, %v1041
  %v1203 = vpack.c.b16 %v1049, %v1042
  %v1204 = vpack.c.b16 %v1057, %v1050
  %v1205 = vpack.c.b16 %v1058, %v1051
  %v1206 = vpack.c.b16 %v1059, %v1052
  %v1207 = vpack.c.b16 %v1060, %v1053
  %v1208 = vpack.c.b16 %v1061, %v1054
  %v1209 = vpack.c.b16 %v1062, %v1055
  %v1210 = vpack.c.b16 %v1063, %v1056
  %v1211 = vpack.c.b16 %v1071, %v1064
  %v1212 = vpack.c.b16 %v1072, %v1065
  %v1213 = vpack.c.b16 %v1073, %v1066
  %v1214 = vpack.c.b16 %v1074, %v1067
  %v1215 = vpack.c.b16 %v1075, %v1068
  %v1216 = vpack.c.b16 %v1076, %v1069
  %v1217 = vpack.c.b16 %v1077, %v1070
  %v1218 = vpack.c.b16 %v1085, %v1078
  %v1219 = vpack.c.b16 %v1086, %v1079
  %v1220 = vpack.c.b16 %v1087, %v1080
  %v1221 = vpack.c.b16 %v1088, %v1081
  %v1222 = vpack.c.b16 %v1089, %v1082
  %v1223 = vpack.c.b16 %v1090, %v1083
  %v1224 = vpack.c.b16 %v1091, %v1084
  %v1225 = vpack.c.b16 %v1099, %v1092
  %v1226 = vpack.c.b16 %v1100, %v1093
  %v1227 = vpack.c.b16 %v1101, %v1094
  %v1228 = vpack.c.b16 %v1102, %v1095
  %v1229 = vpack.c.b16 %v1103, %v1096
  %v1230 = vpack.c.b16 %v1104, %v1097
  %v1231 = vpack.c.b16 %v1105, %v1098
  %v1232 = vpack.c.b16 %v1113, %v1106
  %v1233 = vpack.c.b16 %v1114, %v1107
  %v1234 = vpack.c.b16 %v1115, %v1108
  %v1235 = vpack.c.b16 %v1116, %v1109
  %v1236 = vpack.c.b16 %v1117, %v1110
  %v1237 = vpack.c.b16 %v1118, %v1111
  %v1238 = vpack.c.b16 %v1119, %v1112
  %v1239 = vpack.c.b16 %v1127, %v1120
  %v1240 = vpack.c.b16 %v1128, %v1121
  %v1241 = vpack.c.b16 %v1129, %v1122
  %v1242 = vpack.c.b16 %v1130, %v1123
  %v1243 = vpack.c.b16 %v1131, %v1124
  %v1244 = vpack.c.b16 %v1132, %v1125
  %v1245 = vpack.c.b16 %v1133, %v1126
  %1358 = vmatpush.bf16.msra.mxu0 %v1183
  %1359 = vmatpush.bf16.msra.mxu0 %v1176
  %1360 = vmatpush.bf16.msra.mxu0 %v1169
  %1361 = vmatpush.bf16.msra.mxu0 %v1162
  %1362 = vmatpush.bf16.msra.mxu0 %v1155
  %1363 = vmatpush.bf16.msra.mxu0 %v1148
  %1364 = vmatpush.bf16.msra.mxu0 %v1141
  %1365 = vmatpush.bf16.msra.mxu0 %v1134
  %1366 = vmatmul.bf16.gmra.mxu0 %v606
  %v1367 = vpop.f32.mrf.mxu0
  %v1368 = vadd.f32 %v768, %v1367
  %v1369 = vpop.f32.mrf.mxu0
  %v1370 = vadd.f32 %v768, %v1369
  %1371 = vmatmul.bf16.gmra.mxu0 %v608
  %v1372 = vpop.f32.mrf.mxu0
  %v1373 = vadd.f32 %v768, %v1372
  %v1374 = vpop.f32.mrf.mxu0
  %v1375 = vadd.f32 %v768, %v1374
  %1376 = vmatmul.bf16.gmra.mxu0 %v610
  %v1377 = vpop.f32.mrf.mxu0
  %v1378 = vadd.f32 %v768, %v1377
  %v1379 = vpop.f32.mrf.mxu0
  %v1380 = vadd.f32 %v768, %v1379
  %1381 = vmatmul.bf16.gmra.mxu0 %v612
  %v1382 = vpop.f32.mrf.mxu0
  %v1383 = vadd.f32 %v768, %v1382
  %v1384 = vpop.f32.mrf.mxu0
  %v1385 = vadd.f32 %v768, %v1384
  %1386 = vmatmul.bf16.gmra.mxu0 %v614
  %v1387 = vpop.f32.mrf.mxu0
  %v1388 = vadd.f32 %v768, %v1387
  %v1389 = vpop.f32.mrf.mxu0
  %v1390 = vadd.f32 %v768, %v1389
  %1391 = vmatmul.bf16.gmra.mxu0 %v616
  %v1392 = vpop.f32.mrf.mxu0
  %v1393 = vadd.f32 %v768, %v1392
  %v1394 = vpop.f32.mrf.mxu0
  %v1395 = vadd.f32 %v768, %v1394
  %1396 = vmatmul.bf16.gmra.mxu0 %v618
  %v1397 = vpop.f32.mrf.mxu0
  %v1398 = vadd.f32 %v768, %v1397
  %v1399 = vpop.f32.mrf.mxu0
  %v1400 = vadd.f32 %v768, %v1399
  %1401 = vmatmul.bf16.gmra.mxu0 %v620
  %v1402 = vpop.f32.mrf.mxu0
  %v1403 = vadd.f32 %v768, %v1402
  %v1404 = vpop.f32.mrf.mxu0
  %v1405 = vadd.f32 %v768, %v1404
  %1406 = vmatmul.bf16.gmra.mxu0 %v622
  %v1407 = vpop.f32.mrf.mxu0
  %v1408 = vadd.f32 %v768, %v1407
  %v1409 = vpop.f32.mrf.mxu0
  %v1410 = vadd.f32 %v768, %v1409
  %1411 = vmatmul.bf16.gmra.mxu0 %v624
  %v1412 = vpop.f32.mrf.mxu0
  %v1413 = vadd.f32 %v768, %v1412
  %v1414 = vpop.f32.mrf.mxu0
  %v1415 = vadd.f32 %v768, %v1414
  %1416 = vmatmul.bf16.gmra.mxu0 %v626
  %v1417 = vpop.f32.mrf.mxu0
  %v1418 = vadd.f32 %v768, %v1417
  %v1419 = vpop.f32.mrf.mxu0
  %v1420 = vadd.f32 %v768, %v1419
  %1421 = vmatmul.bf16.gmra.mxu0 %v628
  %v1422 = vpop.f32.mrf.mxu0
  %v1423 = vadd.f32 %v768, %v1422
  %v1424 = vpop.f32.mrf.mxu0
  %v1425 = vadd.f32 %v768, %v1424
  %1426 = vmatmul.bf16.gmra.mxu0 %v630
  %v1427 = vpop.f32.mrf.mxu0
  %v1428 = vadd.f32 %v768, %v1427
  %v1429 = vpop.f32.mrf.mxu0
  %v1430 = vadd.f32 %v768, %v1429
  %1431 = vmatmul.bf16.gmra.mxu0 %v632
  %v1432 = vpop.f32.mrf.mxu0
  %v1433 = vadd.f32 %v768, %v1432
  %v1434 = vpop.f32.mrf.mxu0
  %v1435 = vadd.f32 %v768, %v1434
  %1436 = vmatmul.bf16.gmra.mxu0 %v634
  %v1437 = vpop.f32.mrf.mxu0
  %v1438 = vadd.f32 %v768, %v1437
  %v1439 = vpop.f32.mrf.mxu0
  %v1440 = vadd.f32 %v768, %v1439
  %1441 = vmatmul.bf16.gmra.mxu0 %v636
  %v1442 = vpop.f32.mrf.mxu0
  %v1443 = vadd.f32 %v768, %v1442
  %v1444 = vpop.f32.mrf.mxu0
  %v1445 = vadd.f32 %v768, %v1444
  %1446 = vdwg.mxu0
  %1447 = vmatpush.bf16.msra.mxu0 %v1239
  %1448 = vmatpush.bf16.msra.mxu0 %v1232
  %1449 = vmatpush.bf16.msra.mxu0 %v1225
  %1450 = vmatpush.bf16.msra.mxu0 %v1218
  %1451 = vmatpush.bf16.msra.mxu0 %v1211
  %1452 = vmatpush.bf16.msra.mxu0 %v1204
  %1453 = vmatpush.bf16.msra.mxu0 %v1197
  %1454 = vmatpush.bf16.msra.mxu0 %v1190
  %1455 = vmatmul.bf16.gmra.mxu0 %v607
  %v1456 = vpop.f32.mrf.mxu0
  %v1457 = vadd.f32 %v1368, %v1456
  %v1458 = vpop.f32.mrf.mxu0
  %v1459 = vadd.f32 %v1370, %v1458
  %1460 = vmatmul.bf16.gmra.mxu0 %v609
  %v1461 = vpop.f32.mrf.mxu0
  %v1462 = vadd.f32 %v1373, %v1461
  %v1463 = vpop.f32.mrf.mxu0
  %v1464 = vadd.f32 %v1375, %v1463
  %1465 = vmatmul.bf16.gmra.mxu0 %v611
  %v1466 = vpop.f32.mrf.mxu0
  %v1467 = vadd.f32 %v1378, %v1466
  %v1468 = vpop.f32.mrf.mxu0
  %v1469 = vadd.f32 %v1380, %v1468
  %1470 = vmatmul.bf16.gmra.mxu0 %v613
  %v1471 = vpop.f32.mrf.mxu0
  %v1472 = vadd.f32 %v1383, %v1471
  %v1473 = vpop.f32.mrf.mxu0
  %v1474 = vadd.f32 %v1385, %v1473
  %1475 = vmatmul.bf16.gmra.mxu0 %v615
  %v1476 = vpop.f32.mrf.mxu0
  %v1477 = vadd.f32 %v1388, %v1476
  %v1478 = vpop.f32.mrf.mxu0
  %v1479 = vadd.f32 %v1390, %v1478
  %1480 = vmatmul.bf16.gmra.mxu0 %v617
  %v1481 = vpop.f32.mrf.mxu0
  %v1482 = vadd.f32 %v1393, %v1481
  %v1483 = vpop.f32.mrf.mxu0
  %v1484 = vadd.f32 %v1395, %v1483
  %1485 = vmatmul.bf16.gmra.mxu0 %v619
  %v1486 = vpop.f32.mrf.mxu0
  %v1487 = vadd.f32 %v1398, %v1486
  %v1488 = vpop.f32.mrf.mxu0
  %v1489 = vadd.f32 %v1400, %v1488
  %1490 = vmatmul.bf16.gmra.mxu0 %v621
  %v1491 = vpop.f32.mrf.mxu0
  %v1492 = vadd.f32 %v1403, %v1491
  %v1493 = vpop.f32.mrf.mxu0
  %v1494 = vadd.f32 %v1405, %v1493
  %1495 = vmatmul.bf16.gmra.mxu0 %v623
  %v1496 = vpop.f32.mrf.mxu0
  %v1497 = vadd.f32 %v1408, %v1496
  %v1498 = vpop.f32.mrf.mxu0
  %v1499 = vadd.f32 %v1410, %v1498
  %1500 = vmatmul.bf16.gmra.mxu0 %v625
  %v1501 = vpop.f32.mrf.mxu0
  %v1502 = vadd.f32 %v1413, %v1501
  %v1503 = vpop.f32.mrf.mxu0
  %v1504 = vadd.f32 %v1415, %v1503
  %1505 = vmatmul.bf16.gmra.mxu0 %v627
  %v1506 = vpop.f32.mrf.mxu0
  %v1507 = vadd.f32 %v1418, %v1506
  %v1508 = vpop.f32.mrf.mxu0
  %v1509 = vadd.f32 %v1420, %v1508
  %1510 = vmatmul.bf16.gmra.mxu0 %v629
  %v1511 = vpop.f32.mrf.mxu0
  %v1512 = vadd.f32 %v1423, %v1511
  %v1513 = vpop.f32.mrf.mxu0
  %v1514 = vadd.f32 %v1425, %v1513
  %1515 = vmatmul.bf16.gmra.mxu0 %v631
  %v1516 = vpop.f32.mrf.mxu0
  %v1517 = vadd.f32 %v1428, %v1516
  %v1518 = vpop.f32.mrf.mxu0
  %v1519 = vadd.f32 %v1430, %v1518
  %1520 = vmatmul.bf16.gmra.mxu0 %v633
  %v1521 = vpop.f32.mrf.mxu0
  %v1522 = vadd.f32 %v1433, %v1521
  %v1523 = vpop.f32.mrf.mxu0
  %v1524 = vadd.f32 %v1435, %v1523
  %1525 = vmatmul.bf16.gmra.mxu0 %v635
  %v1526 = vpop.f32.mrf.mxu0
  %v1527 = vadd.f32 %v1438, %v1526
  %v1528 = vpop.f32.mrf.mxu0
  %v1529 = vadd.f32 %v1440, %v1528
  %1530 = vmatmul.bf16.gmra.mxu0 %v637
  %v1531 = vpop.f32.mrf.mxu0
  %v1532 = vadd.f32 %v1443, %v1531
  %v1533 = vpop.f32.mrf.mxu0
  %v1534 = vadd.f32 %v1445, %v1533
  %1535 = vdwg.mxu0
  %1536 = vmatpush.bf16.msra.mxu0 %v1184
  %1537 = vmatpush.bf16.msra.mxu0 %v1177
  %1538 = vmatpush.bf16.msra.mxu0 %v1170
  %1539 = vmatpush.bf16.msra.mxu0 %v1163
  %1540 = vmatpush.bf16.msra.mxu0 %v1156
  %1541 = vmatpush.bf16.msra.mxu0 %v1149
  %1542 = vmatpush.bf16.msra.mxu0 %v1142
  %1543 = vmatpush.bf16.msra.mxu0 %v1135
  %1544 = vmatmul.bf16.gmra.mxu0 %v606
  %v1545 = vpop.f32.mrf.mxu0
  %v1546 = vadd.f32 %v769, %v1545
  %v1547 = vpop.f32.mrf.mxu0
  %v1548 = vadd.f32 %v769, %v1547
  %1549 = vmatmul.bf16.gmra.mxu0 %v608
  %v1550 = vpop.f32.mrf.mxu0
  %v1551 = vadd.f32 %v769, %v1550
  %v1552 = vpop.f32.mrf.mxu0
  %v1553 = vadd.f32 %v769, %v1552
  %1554 = vmatmul.bf16.gmra.mxu0 %v610
  %v1555 = vpop.f32.mrf.mxu0
  %v1556 = vadd.f32 %v769, %v1555
  %v1557 = vpop.f32.mrf.mxu0
  %v1558 = vadd.f32 %v769, %v1557
  %1559 = vmatmul.bf16.gmra.mxu0 %v612
  %v1560 = vpop.f32.mrf.mxu0
  %v1561 = vadd.f32 %v769, %v1560
  %v1562 = vpop.f32.mrf.mxu0
  %v1563 = vadd.f32 %v769, %v1562
  %1564 = vmatmul.bf16.gmra.mxu0 %v614
  %v1565 = vpop.f32.mrf.mxu0
  %v1566 = vadd.f32 %v769, %v1565
  %v1567 = vpop.f32.mrf.mxu0
  %v1568 = vadd.f32 %v769, %v1567
  %1569 = vmatmul.bf16.gmra.mxu0 %v616
  %v1570 = vpop.f32.mrf.mxu0
  %v1571 = vadd.f32 %v769, %v1570
  %v1572 = vpop.f32.mrf.mxu0
  %v1573 = vadd.f32 %v769, %v1572
  %1574 = vmatmul.bf16.gmra.mxu0 %v618
  %v1575 = vpop.f32.mrf.mxu0
  %v1576 = vadd.f32 %v769, %v1575
  %v1577 = vpop.f32.mrf.mxu0
  %v1578 = vadd.f32 %v769, %v1577
  %1579 = vmatmul.bf16.gmra.mxu0 %v620
  %v1580 = vpop.f32.mrf.mxu0
  %v1581 = vadd.f32 %v769, %v1580
  %v1582 = vpop.f32.mrf.mxu0
  %v1583 = vadd.f32 %v769, %v1582
  %1584 = vmatmul.bf16.gmra.mxu0 %v622
  %v1585 = vpop.f32.mrf.mxu0
  %v1586 = vadd.f32 %v769, %v1585
  %v1587 = vpop.f32.mrf.mxu0
  %v1588 = vadd.f32 %v769, %v1587
  %1589 = vmatmul.bf16.gmra.mxu0 %v624
  %v1590 = vpop.f32.mrf.mxu0
  %v1591 = vadd.f32 %v769, %v1590
  %v1592 = vpop.f32.mrf.mxu0
  %v1593 = vadd.f32 %v769, %v1592
  %1594 = vmatmul.bf16.gmra.mxu0 %v626
  %v1595 = vpop.f32.mrf.mxu0
  %v1596 = vadd.f32 %v769, %v1595
  %v1597 = vpop.f32.mrf.mxu0
  %v1598 = vadd.f32 %v769, %v1597
  %1599 = vmatmul.bf16.gmra.mxu0 %v628
  %v1600 = vpop.f32.mrf.mxu0
  %v1601 = vadd.f32 %v769, %v1600
  %v1602 = vpop.f32.mrf.mxu0
  %v1603 = vadd.f32 %v769, %v1602
  %1604 = vmatmul.bf16.gmra.mxu0 %v630
  %v1605 = vpop.f32.mrf.mxu0
  %v1606 = vadd.f32 %v769, %v1605
  %v1607 = vpop.f32.mrf.mxu0
  %v1608 = vadd.f32 %v769, %v1607
  %1609 = vmatmul.bf16.gmra.mxu0 %v632
  %v1610 = vpop.f32.mrf.mxu0
  %v1611 = vadd.f32 %v769, %v1610
  %v1612 = vpop.f32.mrf.mxu0
  %v1613 = vadd.f32 %v769, %v1612
  %1614 = vmatmul.bf16.gmra.mxu0 %v634
  %v1615 = vpop.f32.mrf.mxu0
  %v1616 = vadd.f32 %v769, %v1615
  %v1617 = vpop.f32.mrf.mxu0
  %v1618 = vadd.f32 %v769, %v1617
  %1619 = vmatmul.bf16.gmra.mxu0 %v636
  %v1620 = vpop.f32.mrf.mxu0
  %v1621 = vadd.f32 %v769, %v1620
  %v1622 = vpop.f32.mrf.mxu0
  %v1623 = vadd.f32 %v769, %v1622
  %1624 = vdwg.mxu0
  %1625 = vmatpush.bf16.msra.mxu0 %v1240
  %1626 = vmatpush.bf16.msra.mxu0 %v1233
  %1627 = vmatpush.bf16.msra.mxu0 %v1226
  %1628 = vmatpush.bf16.msra.mxu0 %v1219
  %1629 = vmatpush.bf16.msra.mxu0 %v1212
  %1630 = vmatpush.bf16.msra.mxu0 %v1205
  %1631 = vmatpush.bf16.msra.mxu0 %v1198
  %1632 = vmatpush.bf16.msra.mxu0 %v1191
  %1633 = vmatmul.bf16.gmra.mxu0 %v607
  %v1634 = vpop.f32.mrf.mxu0
  %v1635 = vadd.f32 %v1546, %v1634
  %v1636 = vpop.f32.mrf.mxu0
  %v1637 = vadd.f32 %v1548, %v1636
  %1638 = vmatmul.bf16.gmra.mxu0 %v609
  %v1639 = vpop.f32.mrf.mxu0
  %v1640 = vadd.f32 %v1551, %v1639
  %v1641 = vpop.f32.mrf.mxu0
  %v1642 = vadd.f32 %v1553, %v1641
  %1643 = vmatmul.bf16.gmra.mxu0 %v611
  %v1644 = vpop.f32.mrf.mxu0
  %v1645 = vadd.f32 %v1556, %v1644
  %v1646 = vpop.f32.mrf.mxu0
  %v1647 = vadd.f32 %v1558, %v1646
  %1648 = vmatmul.bf16.gmra.mxu0 %v613
  %v1649 = vpop.f32.mrf.mxu0
  %v1650 = vadd.f32 %v1561, %v1649
  %v1651 = vpop.f32.mrf.mxu0
  %v1652 = vadd.f32 %v1563, %v1651
  %1653 = vmatmul.bf16.gmra.mxu0 %v615
  %v1654 = vpop.f32.mrf.mxu0
  %v1655 = vadd.f32 %v1566, %v1654
  %v1656 = vpop.f32.mrf.mxu0
  %v1657 = vadd.f32 %v1568, %v1656
  %1658 = vmatmul.bf16.gmra.mxu0 %v617
  %v1659 = vpop.f32.mrf.mxu0
  %v1660 = vadd.f32 %v1571, %v1659
  %v1661 = vpop.f32.mrf.mxu0
  %v1662 = vadd.f32 %v1573, %v1661
  %1663 = vmatmul.bf16.gmra.mxu0 %v619
  %v1664 = vpop.f32.mrf.mxu0
  %v1665 = vadd.f32 %v1576, %v1664
  %v1666 = vpop.f32.mrf.mxu0
  %v1667 = vadd.f32 %v1578, %v1666
  %1668 = vmatmul.bf16.gmra.mxu0 %v621
  %v1669 = vpop.f32.mrf.mxu0
  %v1670 = vadd.f32 %v1581, %v1669
  %v1671 = vpop.f32.mrf.mxu0
  %v1672 = vadd.f32 %v1583, %v1671
  %1673 = vmatmul.bf16.gmra.mxu0 %v623
  %v1674 = vpop.f32.mrf.mxu0
  %v1675 = vadd.f32 %v1586, %v1674
  %v1676 = vpop.f32.mrf.mxu0
  %v1677 = vadd.f32 %v1588, %v1676
  %1678 = vmatmul.bf16.gmra.mxu0 %v625
  %v1679 = vpop.f32.mrf.mxu0
  %v1680 = vadd.f32 %v1591, %v1679
  %v1681 = vpop.f32.mrf.mxu0
  %v1682 = vadd.f32 %v1593, %v1681
  %1683 = vmatmul.bf16.gmra.mxu0 %v627
  %v1684 = vpop.f32.mrf.mxu0
  %v1685 = vadd.f32 %v1596, %v1684
  %v1686 = vpop.f32.mrf.mxu0
  %v1687 = vadd.f32 %v1598, %v1686
  %1688 = vmatmul.bf16.gmra.mxu0 %v629
  %v1689 = vpop.f32.mrf.mxu0
  %v1690 = vadd.f32 %v1601, %v1689
  %v1691 = vpop.f32.mrf.mxu0
  %v1692 = vadd.f32 %v1603, %v1691
  %1693 = vmatmul.bf16.gmra.mxu0 %v631
  %v1694 = vpop.f32.mrf.mxu0
  %v1695 = vadd.f32 %v1606, %v1694
  %v1696 = vpop.f32.mrf.mxu0
  %v1697 = vadd.f32 %v1608, %v1696
  %1698 = vmatmul.bf16.gmra.mxu0 %v633
  %v1699 = vpop.f32.mrf.mxu0
  %v1700 = vadd.f32 %v1611, %v1699
  %v1701 = vpop.f32.mrf.mxu0
  %v1702 = vadd.f32 %v1613, %v1701
  %1703 = vmatmul.bf16.gmra.mxu0 %v635
  %v1704 = vpop.f32.mrf.mxu0
  %v1705 = vadd.f32 %v1616, %v1704
  %v1706 = vpop.f32.mrf.mxu0
  %v1707 = vadd.f32 %v1618, %v1706
  %1708 = vmatmul.bf16.gmra.mxu0 %v637
  %v1709 = vpop.f32.mrf.mxu0
  %v1710 = vadd.f32 %v1621, %v1709
  %v1711 = vpop.f32.mrf.mxu0
  %v1712 = vadd.f32 %v1623, %v1711
  %1713 = vdwg.mxu0
  %1714 = vmatpush.bf16.msra.mxu0 %v1185
  %1715 = vmatpush.bf16.msra.mxu0 %v1178
  %1716 = vmatpush.bf16.msra.mxu0 %v1171
  %1717 = vmatpush.bf16.msra.mxu0 %v1164
  %1718 = vmatpush.bf16.msra.mxu0 %v1157
  %1719 = vmatpush.bf16.msra.mxu0 %v1150
  %1720 = vmatpush.bf16.msra.mxu0 %v1143
  %1721 = vmatpush.bf16.msra.mxu0 %v1136
  %1722 = vmatmul.bf16.gmra.mxu0 %v606
  %v1723 = vpop.f32.mrf.mxu0
  %v1724 = vadd.f32 %v770, %v1723
  %v1725 = vpop.f32.mrf.mxu0
  %v1726 = vadd.f32 %v770, %v1725
  %1727 = vmatmul.bf16.gmra.mxu0 %v608
  %v1728 = vpop.f32.mrf.mxu0
  %v1729 = vadd.f32 %v770, %v1728
  %v1730 = vpop.f32.mrf.mxu0
  %v1731 = vadd.f32 %v770, %v1730
  %1732 = vmatmul.bf16.gmra.mxu0 %v610
  %v1733 = vpop.f32.mrf.mxu0
  %v1734 = vadd.f32 %v770, %v1733
  %v1735 = vpop.f32.mrf.mxu0
  %v1736 = vadd.f32 %v770, %v1735
  %1737 = vmatmul.bf16.gmra.mxu0 %v612
  %v1738 = vpop.f32.mrf.mxu0
  %v1739 = vadd.f32 %v770, %v1738
  %v1740 = vpop.f32.mrf.mxu0
  %v1741 = vadd.f32 %v770, %v1740
  %1742 = vmatmul.bf16.gmra.mxu0 %v614
  %v1743 = vpop.f32.mrf.mxu0
  %v1744 = vadd.f32 %v770, %v1743
  %v1745 = vpop.f32.mrf.mxu0
  %v1746 = vadd.f32 %v770, %v1745
  %1747 = vmatmul.bf16.gmra.mxu0 %v616
  %v1748 = vpop.f32.mrf.mxu0
  %v1749 = vadd.f32 %v770, %v1748
  %v1750 = vpop.f32.mrf.mxu0
  %v1751 = vadd.f32 %v770, %v1750
  %1752 = vmatmul.bf16.gmra.mxu0 %v618
  %v1753 = vpop.f32.mrf.mxu0
  %v1754 = vadd.f32 %v770, %v1753
  %v1755 = vpop.f32.mrf.mxu0
  %v1756 = vadd.f32 %v770, %v1755
  %1757 = vmatmul.bf16.gmra.mxu0 %v620
  %v1758 = vpop.f32.mrf.mxu0
  %v1759 = vadd.f32 %v770, %v1758
  %v1760 = vpop.f32.mrf.mxu0
  %v1761 = vadd.f32 %v770, %v1760
  %1762 = vmatmul.bf16.gmra.mxu0 %v622
  %v1763 = vpop.f32.mrf.mxu0
  %v1764 = vadd.f32 %v770, %v1763
  %v1765 = vpop.f32.mrf.mxu0
  %v1766 = vadd.f32 %v770, %v1765
  %1767 = vmatmul.bf16.gmra.mxu0 %v624
  %v1768 = vpop.f32.mrf.mxu0
  %v1769 = vadd.f32 %v770, %v1768
  %v1770 = vpop.f32.mrf.mxu0
  %v1771 = vadd.f32 %v770, %v1770
  %1772 = vmatmul.bf16.gmra.mxu0 %v626
  %v1773 = vpop.f32.mrf.mxu0
  %v1774 = vadd.f32 %v770, %v1773
  %v1775 = vpop.f32.mrf.mxu0
  %v1776 = vadd.f32 %v770, %v1775
  %1777 = vmatmul.bf16.gmra.mxu0 %v628
  %v1778 = vpop.f32.mrf.mxu0
  %v1779 = vadd.f32 %v770, %v1778
  %v1780 = vpop.f32.mrf.mxu0
  %v1781 = vadd.f32 %v770, %v1780
  %1782 = vmatmul.bf16.gmra.mxu0 %v630
  %v1783 = vpop.f32.mrf.mxu0
  %v1784 = vadd.f32 %v770, %v1783
  %v1785 = vpop.f32.mrf.mxu0
  %v1786 = vadd.f32 %v770, %v1785
  %1787 = vmatmul.bf16.gmra.mxu0 %v632
  %v1788 = vpop.f32.mrf.mxu0
  %v1789 = vadd.f32 %v770, %v1788
  %v1790 = vpop.f32.mrf.mxu0
  %v1791 = vadd.f32 %v770, %v1790
  %1792 = vmatmul.bf16.gmra.mxu0 %v634
  %v1793 = vpop.f32.mrf.mxu0
  %v1794 = vadd.f32 %v770, %v1793
  %v1795 = vpop.f32.mrf.mxu0
  %v1796 = vadd.f32 %v770, %v1795
  %1797 = vmatmul.bf16.gmra.mxu0 %v636
  %v1798 = vpop.f32.mrf.mxu0
  %v1799 = vadd.f32 %v770, %v1798
  %v1800 = vpop.f32.mrf.mxu0
  %v1801 = vadd.f32 %v770, %v1800
  %1802 = vdwg.mxu0
  %1803 = vmatpush.bf16.msra.mxu0 %v1241
  %1804 = vmatpush.bf16.msra.mxu0 %v1234
  %1805 = vmatpush.bf16.msra.mxu0 %v1227
  %1806 = vmatpush.bf16.msra.mxu0 %v1220
  %1807 = vmatpush.bf16.msra.mxu0 %v1213
  %1808 = vmatpush.bf16.msra.mxu0 %v1206
  %1809 = vmatpush.bf16.msra.mxu0 %v1199
  %1810 = vmatpush.bf16.msra.mxu0 %v1192
  %1811 = vmatmul.bf16.gmra.mxu0 %v607
  %v1812 = vpop.f32.mrf.mxu0
  %v1813 = vadd.f32 %v1724, %v1812
  %v1814 = vpop.f32.mrf.mxu0
  %v1815 = vadd.f32 %v1726, %v1814
  %1816 = vmatmul.bf16.gmra.mxu0 %v609
  %v1817 = vpop.f32.mrf.mxu0
  %v1818 = vadd.f32 %v1729, %v1817
  %v1819 = vpop.f32.mrf.mxu0
  %v1820 = vadd.f32 %v1731, %v1819
  %1821 = vmatmul.bf16.gmra.mxu0 %v611
  %v1822 = vpop.f32.mrf.mxu0
  %v1823 = vadd.f32 %v1734, %v1822
  %v1824 = vpop.f32.mrf.mxu0
  %v1825 = vadd.f32 %v1736, %v1824
  %1826 = vmatmul.bf16.gmra.mxu0 %v613
  %v1827 = vpop.f32.mrf.mxu0
  %v1828 = vadd.f32 %v1739, %v1827
  %v1829 = vpop.f32.mrf.mxu0
  %v1830 = vadd.f32 %v1741, %v1829
  %1831 = vmatmul.bf16.gmra.mxu0 %v615
  %v1832 = vpop.f32.mrf.mxu0
  %v1833 = vadd.f32 %v1744, %v1832
  %v1834 = vpop.f32.mrf.mxu0
  %v1835 = vadd.f32 %v1746, %v1834
  %1836 = vmatmul.bf16.gmra.mxu0 %v617
  %v1837 = vpop.f32.mrf.mxu0
  %v1838 = vadd.f32 %v1749, %v1837
  %v1839 = vpop.f32.mrf.mxu0
  %v1840 = vadd.f32 %v1751, %v1839
  %1841 = vmatmul.bf16.gmra.mxu0 %v619
  %v1842 = vpop.f32.mrf.mxu0
  %v1843 = vadd.f32 %v1754, %v1842
  %v1844 = vpop.f32.mrf.mxu0
  %v1845 = vadd.f32 %v1756, %v1844
  %1846 = vmatmul.bf16.gmra.mxu0 %v621
  %v1847 = vpop.f32.mrf.mxu0
  %v1848 = vadd.f32 %v1759, %v1847
  %v1849 = vpop.f32.mrf.mxu0
  %v1850 = vadd.f32 %v1761, %v1849
  %1851 = vmatmul.bf16.gmra.mxu0 %v623
  %v1852 = vpop.f32.mrf.mxu0
  %v1853 = vadd.f32 %v1764, %v1852
  %v1854 = vpop.f32.mrf.mxu0
  %v1855 = vadd.f32 %v1766, %v1854
  %1856 = vmatmul.bf16.gmra.mxu0 %v625
  %v1857 = vpop.f32.mrf.mxu0
  %v1858 = vadd.f32 %v1769, %v1857
  %v1859 = vpop.f32.mrf.mxu0
  %v1860 = vadd.f32 %v1771, %v1859
  %1861 = vmatmul.bf16.gmra.mxu0 %v627
  %v1862 = vpop.f32.mrf.mxu0
  %v1863 = vadd.f32 %v1774, %v1862
  %v1864 = vpop.f32.mrf.mxu0
  %v1865 = vadd.f32 %v1776, %v1864
  %1866 = vmatmul.bf16.gmra.mxu0 %v629
  %v1867 = vpop.f32.mrf.mxu0
  %v1868 = vadd.f32 %v1779, %v1867
  %v1869 = vpop.f32.mrf.mxu0
  %v1870 = vadd.f32 %v1781, %v1869
  %1871 = vmatmul.bf16.gmra.mxu0 %v631
  %v1872 = vpop.f32.mrf.mxu0
  %v1873 = vadd.f32 %v1784, %v1872
  %v1874 = vpop.f32.mrf.mxu0
  %v1875 = vadd.f32 %v1786, %v1874
  %1876 = vmatmul.bf16.gmra.mxu0 %v633
  %v1877 = vpop.f32.mrf.mxu0
  %v1878 = vadd.f32 %v1789, %v1877
  %v1879 = vpop.f32.mrf.mxu0
  %v1880 = vadd.f32 %v1791, %v1879
  %1881 = vmatmul.bf16.gmra.mxu0 %v635
  %v1882 = vpop.f32.mrf.mxu0
  %v1883 = vadd.f32 %v1794, %v1882
  %v1884 = vpop.f32.mrf.mxu0
  %v1885 = vadd.f32 %v1796, %v1884
  %1886 = vmatmul.bf16.gmra.mxu0 %v637
  %v1887 = vpop.f32.mrf.mxu0
  %v1888 = vadd.f32 %v1799, %v1887
  %v1889 = vpop.f32.mrf.mxu0
  %v1890 = vadd.f32 %v1801, %v1889
  %1891 = vdwg.mxu0
  %1892 = vmatpush.bf16.msra.mxu0 %v1186
  %1893 = vmatpush.bf16.msra.mxu0 %v1179
  %1894 = vmatpush.bf16.msra.mxu0 %v1172
  %1895 = vmatpush.bf16.msra.mxu0 %v1165
  %1896 = vmatpush.bf16.msra.mxu0 %v1158
  %1897 = vmatpush.bf16.msra.mxu0 %v1151
  %1898 = vmatpush.bf16.msra.mxu0 %v1144
  %1899 = vmatpush.bf16.msra.mxu0 %v1137
  %1900 = vmatmul.bf16.gmra.mxu0 %v606
  %v1901 = vpop.f32.mrf.mxu0
  %v1902 = vadd.f32 %v771, %v1901
  %v1903 = vpop.f32.mrf.mxu0
  %v1904 = vadd.f32 %v771, %v1903
  %1905 = vmatmul.bf16.gmra.mxu0 %v608
  %v1906 = vpop.f32.mrf.mxu0
  %v1907 = vadd.f32 %v771, %v1906
  %v1908 = vpop.f32.mrf.mxu0
  %v1909 = vadd.f32 %v771, %v1908
  %1910 = vmatmul.bf16.gmra.mxu0 %v610
  %v1911 = vpop.f32.mrf.mxu0
  %v1912 = vadd.f32 %v771, %v1911
  %v1913 = vpop.f32.mrf.mxu0
  %v1914 = vadd.f32 %v771, %v1913
  %1915 = vmatmul.bf16.gmra.mxu0 %v612
  %v1916 = vpop.f32.mrf.mxu0
  %v1917 = vadd.f32 %v771, %v1916
  %v1918 = vpop.f32.mrf.mxu0
  %v1919 = vadd.f32 %v771, %v1918
  %1920 = vmatmul.bf16.gmra.mxu0 %v614
  %v1921 = vpop.f32.mrf.mxu0
  %v1922 = vadd.f32 %v771, %v1921
  %v1923 = vpop.f32.mrf.mxu0
  %v1924 = vadd.f32 %v771, %v1923
  %1925 = vmatmul.bf16.gmra.mxu0 %v616
  %v1926 = vpop.f32.mrf.mxu0
  %v1927 = vadd.f32 %v771, %v1926
  %v1928 = vpop.f32.mrf.mxu0
  %v1929 = vadd.f32 %v771, %v1928
  %1930 = vmatmul.bf16.gmra.mxu0 %v618
  %v1931 = vpop.f32.mrf.mxu0
  %v1932 = vadd.f32 %v771, %v1931
  %v1933 = vpop.f32.mrf.mxu0
  %v1934 = vadd.f32 %v771, %v1933
  %1935 = vmatmul.bf16.gmra.mxu0 %v620
  %v1936 = vpop.f32.mrf.mxu0
  %v1937 = vadd.f32 %v771, %v1936
  %v1938 = vpop.f32.mrf.mxu0
  %v1939 = vadd.f32 %v771, %v1938
  %1940 = vmatmul.bf16.gmra.mxu0 %v622
  %v1941 = vpop.f32.mrf.mxu0
  %v1942 = vadd.f32 %v771, %v1941
  %v1943 = vpop.f32.mrf.mxu0
  %v1944 = vadd.f32 %v771, %v1943
  %1945 = vmatmul.bf16.gmra.mxu0 %v624
  %v1946 = vpop.f32.mrf.mxu0
  %v1947 = vadd.f32 %v771, %v1946
  %v1948 = vpop.f32.mrf.mxu0
  %v1949 = vadd.f32 %v771, %v1948
  %1950 = vmatmul.bf16.gmra.mxu0 %v626
  %v1951 = vpop.f32.mrf.mxu0
  %v1952 = vadd.f32 %v771, %v1951
  %v1953 = vpop.f32.mrf.mxu0
  %v1954 = vadd.f32 %v771, %v1953
  %1955 = vmatmul.bf16.gmra.mxu0 %v628
  %v1956 = vpop.f32.mrf.mxu0
  %v1957 = vadd.f32 %v771, %v1956
  %v1958 = vpop.f32.mrf.mxu0
  %v1959 = vadd.f32 %v771, %v1958
  %1960 = vmatmul.bf16.gmra.mxu0 %v630
  %v1961 = vpop.f32.mrf.mxu0
  %v1962 = vadd.f32 %v771, %v1961
  %v1963 = vpop.f32.mrf.mxu0
  %v1964 = vadd.f32 %v771, %v1963
  %1965 = vmatmul.bf16.gmra.mxu0 %v632
  %v1966 = vpop.f32.mrf.mxu0
  %v1967 = vadd.f32 %v771, %v1966
  %v1968 = vpop.f32.mrf.mxu0
  %v1969 = vadd.f32 %v771, %v1968
  %1970 = vmatmul.bf16.gmra.mxu0 %v634
  %v1971 = vpop.f32.mrf.mxu0
  %v1972 = vadd.f32 %v771, %v1971
  %v1973 = vpop.f32.mrf.mxu0
  %v1974 = vadd.f32 %v771, %v1973
  %1975 = vmatmul.bf16.gmra.mxu0 %v636
  %v1976 = vpop.f32.mrf.mxu0
  %v1977 = vadd.f32 %v771, %v1976
  %v1978 = vpop.f32.mrf.mxu0
  %v1979 = vadd.f32 %v771, %v1978
  %1980 = vdwg.mxu0
  %1981 = vmatpush.bf16.msra.mxu0 %v1242
  %1982 = vmatpush.bf16.msra.mxu0 %v1235
  %1983 = vmatpush.bf16.msra.mxu0 %v1228
  %1984 = vmatpush.bf16.msra.mxu0 %v1221
  %1985 = vmatpush.bf16.msra.mxu0 %v1214
  %1986 = vmatpush.bf16.msra.mxu0 %v1207
  %1987 = vmatpush.bf16.msra.mxu0 %v1200
  %1988 = vmatpush.bf16.msra.mxu0 %v1193
  %1989 = vmatmul.bf16.gmra.mxu0 %v607
  %v1990 = vpop.f32.mrf.mxu0
  %v1991 = vadd.f32 %v1902, %v1990
  %v1992 = vpop.f32.mrf.mxu0
  %v1993 = vadd.f32 %v1904, %v1992
  %1994 = vmatmul.bf16.gmra.mxu0 %v609
  %v1995 = vpop.f32.mrf.mxu0
  %v1996 = vadd.f32 %v1907, %v1995
  %v1997 = vpop.f32.mrf.mxu0
  %v1998 = vadd.f32 %v1909, %v1997
  %1999 = vmatmul.bf16.gmra.mxu0 %v611
  %v2000 = vpop.f32.mrf.mxu0
  %v2001 = vadd.f32 %v1912, %v2000
  %v2002 = vpop.f32.mrf.mxu0
  %v2003 = vadd.f32 %v1914, %v2002
  %2004 = vmatmul.bf16.gmra.mxu0 %v613
  %v2005 = vpop.f32.mrf.mxu0
  %v2006 = vadd.f32 %v1917, %v2005
  %v2007 = vpop.f32.mrf.mxu0
  %v2008 = vadd.f32 %v1919, %v2007
  %2009 = vmatmul.bf16.gmra.mxu0 %v615
  %v2010 = vpop.f32.mrf.mxu0
  %v2011 = vadd.f32 %v1922, %v2010
  %v2012 = vpop.f32.mrf.mxu0
  %v2013 = vadd.f32 %v1924, %v2012
  %2014 = vmatmul.bf16.gmra.mxu0 %v617
  %v2015 = vpop.f32.mrf.mxu0
  %v2016 = vadd.f32 %v1927, %v2015
  %v2017 = vpop.f32.mrf.mxu0
  %v2018 = vadd.f32 %v1929, %v2017
  %2019 = vmatmul.bf16.gmra.mxu0 %v619
  %v2020 = vpop.f32.mrf.mxu0
  %v2021 = vadd.f32 %v1932, %v2020
  %v2022 = vpop.f32.mrf.mxu0
  %v2023 = vadd.f32 %v1934, %v2022
  %2024 = vmatmul.bf16.gmra.mxu0 %v621
  %v2025 = vpop.f32.mrf.mxu0
  %v2026 = vadd.f32 %v1937, %v2025
  %v2027 = vpop.f32.mrf.mxu0
  %v2028 = vadd.f32 %v1939, %v2027
  %2029 = vmatmul.bf16.gmra.mxu0 %v623
  %v2030 = vpop.f32.mrf.mxu0
  %v2031 = vadd.f32 %v1942, %v2030
  %v2032 = vpop.f32.mrf.mxu0
  %v2033 = vadd.f32 %v1944, %v2032
  %2034 = vmatmul.bf16.gmra.mxu0 %v625
  %v2035 = vpop.f32.mrf.mxu0
  %v2036 = vadd.f32 %v1947, %v2035
  %v2037 = vpop.f32.mrf.mxu0
  %v2038 = vadd.f32 %v1949, %v2037
  %2039 = vmatmul.bf16.gmra.mxu0 %v627
  %v2040 = vpop.f32.mrf.mxu0
  %v2041 = vadd.f32 %v1952, %v2040
  %v2042 = vpop.f32.mrf.mxu0
  %v2043 = vadd.f32 %v1954, %v2042
  %2044 = vmatmul.bf16.gmra.mxu0 %v629
  %v2045 = vpop.f32.mrf.mxu0
  %v2046 = vadd.f32 %v1957, %v2045
  %v2047 = vpop.f32.mrf.mxu0
  %v2048 = vadd.f32 %v1959, %v2047
  %2049 = vmatmul.bf16.gmra.mxu0 %v631
  %v2050 = vpop.f32.mrf.mxu0
  %v2051 = vadd.f32 %v1962, %v2050
  %v2052 = vpop.f32.mrf.mxu0
  %v2053 = vadd.f32 %v1964, %v2052
  %2054 = vmatmul.bf16.gmra.mxu0 %v633
  %v2055 = vpop.f32.mrf.mxu0
  %v2056 = vadd.f32 %v1967, %v2055
  %v2057 = vpop.f32.mrf.mxu0
  %v2058 = vadd.f32 %v1969, %v2057
  %2059 = vmatmul.bf16.gmra.mxu0 %v635
  %v2060 = vpop.f32.mrf.mxu0
  %v2061 = vadd.f32 %v1972, %v2060
  %v2062 = vpop.f32.mrf.mxu0
  %v2063 = vadd.f32 %v1974, %v2062
  %2064 = vmatmul.bf16.gmra.mxu0 %v637
  %v2065 = vpop.f32.mrf.mxu0
  %v2066 = vadd.f32 %v1977, %v2065
  %v2067 = vpop.f32.mrf.mxu0
  %v2068 = vadd.f32 %v1979, %v2067
  %2069 = vdwg.mxu0
  %2070 = vmatpush.bf16.msra.mxu0 %v1187
  %2071 = vmatpush.bf16.msra.mxu0 %v1180
  %2072 = vmatpush.bf16.msra.mxu0 %v1173
  %2073 = vmatpush.bf16.msra.mxu0 %v1166
  %2074 = vmatpush.bf16.msra.mxu0 %v1159
  %2075 = vmatpush.bf16.msra.mxu0 %v1152
  %2076 = vmatpush.bf16.msra.mxu0 %v1145
  %2077 = vmatpush.bf16.msra.mxu0 %v1138
  %2078 = vmatmul.bf16.gmra.mxu0 %v606
  %v2079 = vpop.f32.mrf.mxu0
  %v2080 = vadd.f32 %v772, %v2079
  %v2081 = vpop.f32.mrf.mxu0
  %v2082 = vadd.f32 %v772, %v2081
  %2083 = vmatmul.bf16.gmra.mxu0 %v608
  %v2084 = vpop.f32.mrf.mxu0
  %v2085 = vadd.f32 %v772, %v2084
  %v2086 = vpop.f32.mrf.mxu0
  %v2087 = vadd.f32 %v772, %v2086
  %2088 = vmatmul.bf16.gmra.mxu0 %v610
  %v2089 = vpop.f32.mrf.mxu0
  %v2090 = vadd.f32 %v772, %v2089
  %v2091 = vpop.f32.mrf.mxu0
  %v2092 = vadd.f32 %v772, %v2091
  %2093 = vmatmul.bf16.gmra.mxu0 %v612
  %v2094 = vpop.f32.mrf.mxu0
  %v2095 = vadd.f32 %v772, %v2094
  %v2096 = vpop.f32.mrf.mxu0
  %v2097 = vadd.f32 %v772, %v2096
  %2098 = vmatmul.bf16.gmra.mxu0 %v614
  %v2099 = vpop.f32.mrf.mxu0
  %v2100 = vadd.f32 %v772, %v2099
  %v2101 = vpop.f32.mrf.mxu0
  %v2102 = vadd.f32 %v772, %v2101
  %2103 = vmatmul.bf16.gmra.mxu0 %v616
  %v2104 = vpop.f32.mrf.mxu0
  %v2105 = vadd.f32 %v772, %v2104
  %v2106 = vpop.f32.mrf.mxu0
  %v2107 = vadd.f32 %v772, %v2106
  %2108 = vmatmul.bf16.gmra.mxu0 %v618
  %v2109 = vpop.f32.mrf.mxu0
  %v2110 = vadd.f32 %v772, %v2109
  %v2111 = vpop.f32.mrf.mxu0
  %v2112 = vadd.f32 %v772, %v2111
  %2113 = vmatmul.bf16.gmra.mxu0 %v620
  %v2114 = vpop.f32.mrf.mxu0
  %v2115 = vadd.f32 %v772, %v2114
  %v2116 = vpop.f32.mrf.mxu0
  %v2117 = vadd.f32 %v772, %v2116
  %2118 = vmatmul.bf16.gmra.mxu0 %v622
  %v2119 = vpop.f32.mrf.mxu0
  %v2120 = vadd.f32 %v772, %v2119
  %v2121 = vpop.f32.mrf.mxu0
  %v2122 = vadd.f32 %v772, %v2121
  %2123 = vmatmul.bf16.gmra.mxu0 %v624
  %v2124 = vpop.f32.mrf.mxu0
  %v2125 = vadd.f32 %v772, %v2124
  %v2126 = vpop.f32.mrf.mxu0
  %v2127 = vadd.f32 %v772, %v2126
  %2128 = vmatmul.bf16.gmra.mxu0 %v626
  %v2129 = vpop.f32.mrf.mxu0
  %v2130 = vadd.f32 %v772, %v2129
  %v2131 = vpop.f32.mrf.mxu0
  %v2132 = vadd.f32 %v772, %v2131
  %2133 = vmatmul.bf16.gmra.mxu0 %v628
  %v2134 = vpop.f32.mrf.mxu0
  %v2135 = vadd.f32 %v772, %v2134
  %v2136 = vpop.f32.mrf.mxu0
  %v2137 = vadd.f32 %v772, %v2136
  %2138 = vmatmul.bf16.gmra.mxu0 %v630
  %v2139 = vpop.f32.mrf.mxu0
  %v2140 = vadd.f32 %v772, %v2139
  %v2141 = vpop.f32.mrf.mxu0
  %v2142 = vadd.f32 %v772, %v2141
  %2143 = vmatmul.bf16.gmra.mxu0 %v632
  %v2144 = vpop.f32.mrf.mxu0
  %v2145 = vadd.f32 %v772, %v2144
  %v2146 = vpop.f32.mrf.mxu0
  %v2147 = vadd.f32 %v772, %v2146
  %2148 = vmatmul.bf16.gmra.mxu0 %v634
  %v2149 = vpop.f32.mrf.mxu0
  %v2150 = vadd.f32 %v772, %v2149
  %v2151 = vpop.f32.mrf.mxu0
  %v2152 = vadd.f32 %v772, %v2151
  %2153 = vmatmul.bf16.gmra.mxu0 %v636
  %v2154 = vpop.f32.mrf.mxu0
  %v2155 = vadd.f32 %v772, %v2154
  %v2156 = vpop.f32.mrf.mxu0
  %v2157 = vadd.f32 %v772, %v2156
  %2158 = vdwg.mxu0
  %2159 = vmatpush.bf16.msra.mxu0 %v1243
  %2160 = vmatpush.bf16.msra.mxu0 %v1236
  %2161 = vmatpush.bf16.msra.mxu0 %v1229
  %2162 = vmatpush.bf16.msra.mxu0 %v1222
  %2163 = vmatpush.bf16.msra.mxu0 %v1215
  %2164 = vmatpush.bf16.msra.mxu0 %v1208
  %2165 = vmatpush.bf16.msra.mxu0 %v1201
  %2166 = vmatpush.bf16.msra.mxu0 %v1194
  %2167 = vmatmul.bf16.gmra.mxu0 %v607
  %v2168 = vpop.f32.mrf.mxu0
  %v2169 = vadd.f32 %v2080, %v2168
  %v2170 = vpop.f32.mrf.mxu0
  %v2171 = vadd.f32 %v2082, %v2170
  %2172 = vmatmul.bf16.gmra.mxu0 %v609
  %v2173 = vpop.f32.mrf.mxu0
  %v2174 = vadd.f32 %v2085, %v2173
  %v2175 = vpop.f32.mrf.mxu0
  %v2176 = vadd.f32 %v2087, %v2175
  %2177 = vmatmul.bf16.gmra.mxu0 %v611
  %v2178 = vpop.f32.mrf.mxu0
  %v2179 = vadd.f32 %v2090, %v2178
  %v2180 = vpop.f32.mrf.mxu0
  %v2181 = vadd.f32 %v2092, %v2180
  %2182 = vmatmul.bf16.gmra.mxu0 %v613
  %v2183 = vpop.f32.mrf.mxu0
  %v2184 = vadd.f32 %v2095, %v2183
  %v2185 = vpop.f32.mrf.mxu0
  %v2186 = vadd.f32 %v2097, %v2185
  %2187 = vmatmul.bf16.gmra.mxu0 %v615
  %v2188 = vpop.f32.mrf.mxu0
  %v2189 = vadd.f32 %v2100, %v2188
  %v2190 = vpop.f32.mrf.mxu0
  %v2191 = vadd.f32 %v2102, %v2190
  %2192 = vmatmul.bf16.gmra.mxu0 %v617
  %v2193 = vpop.f32.mrf.mxu0
  %v2194 = vadd.f32 %v2105, %v2193
  %v2195 = vpop.f32.mrf.mxu0
  %v2196 = vadd.f32 %v2107, %v2195
  %2197 = vmatmul.bf16.gmra.mxu0 %v619
  %v2198 = vpop.f32.mrf.mxu0
  %v2199 = vadd.f32 %v2110, %v2198
  %v2200 = vpop.f32.mrf.mxu0
  %v2201 = vadd.f32 %v2112, %v2200
  %2202 = vmatmul.bf16.gmra.mxu0 %v621
  %v2203 = vpop.f32.mrf.mxu0
  %v2204 = vadd.f32 %v2115, %v2203
  %v2205 = vpop.f32.mrf.mxu0
  %v2206 = vadd.f32 %v2117, %v2205
  %2207 = vmatmul.bf16.gmra.mxu0 %v623
  %v2208 = vpop.f32.mrf.mxu0
  %v2209 = vadd.f32 %v2120, %v2208
  %v2210 = vpop.f32.mrf.mxu0
  %v2211 = vadd.f32 %v2122, %v2210
  %2212 = vmatmul.bf16.gmra.mxu0 %v625
  %v2213 = vpop.f32.mrf.mxu0
  %v2214 = vadd.f32 %v2125, %v2213
  %v2215 = vpop.f32.mrf.mxu0
  %v2216 = vadd.f32 %v2127, %v2215
  %2217 = vmatmul.bf16.gmra.mxu0 %v627
  %v2218 = vpop.f32.mrf.mxu0
  %v2219 = vadd.f32 %v2130, %v2218
  %v2220 = vpop.f32.mrf.mxu0
  %v2221 = vadd.f32 %v2132, %v2220
  %2222 = vmatmul.bf16.gmra.mxu0 %v629
  %v2223 = vpop.f32.mrf.mxu0
  %v2224 = vadd.f32 %v2135, %v2223
  %v2225 = vpop.f32.mrf.mxu0
  %v2226 = vadd.f32 %v2137, %v2225
  %2227 = vmatmul.bf16.gmra.mxu0 %v631
  %v2228 = vpop.f32.mrf.mxu0
  %v2229 = vadd.f32 %v2140, %v2228
  %v2230 = vpop.f32.mrf.mxu0
  %v2231 = vadd.f32 %v2142, %v2230
  %2232 = vmatmul.bf16.gmra.mxu0 %v633
  %v2233 = vpop.f32.mrf.mxu0
  %v2234 = vadd.f32 %v2145, %v2233
  %v2235 = vpop.f32.mrf.mxu0
  %v2236 = vadd.f32 %v2147, %v2235
  %2237 = vmatmul.bf16.gmra.mxu0 %v635
  %v2238 = vpop.f32.mrf.mxu0
  %v2239 = vadd.f32 %v2150, %v2238
  %v2240 = vpop.f32.mrf.mxu0
  %v2241 = vadd.f32 %v2152, %v2240
  %2242 = vmatmul.bf16.gmra.mxu0 %v637
  %v2243 = vpop.f32.mrf.mxu0
  %v2244 = vadd.f32 %v2155, %v2243
  %v2245 = vpop.f32.mrf.mxu0
  %v2246 = vadd.f32 %v2157, %v2245
  %2247 = vdwg.mxu0
  %2248 = vmatpush.bf16.msra.mxu0 %v1188
  %2249 = vmatpush.bf16.msra.mxu0 %v1181
  %2250 = vmatpush.bf16.msra.mxu0 %v1174
  %2251 = vmatpush.bf16.msra.mxu0 %v1167
  %2252 = vmatpush.bf16.msra.mxu0 %v1160
  %2253 = vmatpush.bf16.msra.mxu0 %v1153
  %2254 = vmatpush.bf16.msra.mxu0 %v1146
  %2255 = vmatpush.bf16.msra.mxu0 %v1139
  %2256 = vmatmul.bf16.gmra.mxu0 %v606
  %v2257 = vpop.f32.mrf.mxu0
  %v2258 = vadd.f32 %v773, %v2257
  %v2259 = vpop.f32.mrf.mxu0
  %v2260 = vadd.f32 %v773, %v2259
  %2261 = vmatmul.bf16.gmra.mxu0 %v608
  %v2262 = vpop.f32.mrf.mxu0
  %v2263 = vadd.f32 %v773, %v2262
  %v2264 = vpop.f32.mrf.mxu0
  %v2265 = vadd.f32 %v773, %v2264
  %2266 = vmatmul.bf16.gmra.mxu0 %v610
  %v2267 = vpop.f32.mrf.mxu0
  %v2268 = vadd.f32 %v773, %v2267
  %v2269 = vpop.f32.mrf.mxu0
  %v2270 = vadd.f32 %v773, %v2269
  %2271 = vmatmul.bf16.gmra.mxu0 %v612
  %v2272 = vpop.f32.mrf.mxu0
  %v2273 = vadd.f32 %v773, %v2272
  %v2274 = vpop.f32.mrf.mxu0
  %v2275 = vadd.f32 %v773, %v2274
  %2276 = vmatmul.bf16.gmra.mxu0 %v614
  %v2277 = vpop.f32.mrf.mxu0
  %v2278 = vadd.f32 %v773, %v2277
  %v2279 = vpop.f32.mrf.mxu0
  %v2280 = vadd.f32 %v773, %v2279
  %2281 = vmatmul.bf16.gmra.mxu0 %v616
  %v2282 = vpop.f32.mrf.mxu0
  %v2283 = vadd.f32 %v773, %v2282
  %v2284 = vpop.f32.mrf.mxu0
  %v2285 = vadd.f32 %v773, %v2284
  %2286 = vmatmul.bf16.gmra.mxu0 %v618
  %v2287 = vpop.f32.mrf.mxu0
  %v2288 = vadd.f32 %v773, %v2287
  %v2289 = vpop.f32.mrf.mxu0
  %v2290 = vadd.f32 %v773, %v2289
  %2291 = vmatmul.bf16.gmra.mxu0 %v620
  %v2292 = vpop.f32.mrf.mxu0
  %v2293 = vadd.f32 %v773, %v2292
  %v2294 = vpop.f32.mrf.mxu0
  %v2295 = vadd.f32 %v773, %v2294
  %2296 = vmatmul.bf16.gmra.mxu0 %v622
  %v2297 = vpop.f32.mrf.mxu0
  %v2298 = vadd.f32 %v773, %v2297
  %v2299 = vpop.f32.mrf.mxu0
  %v2300 = vadd.f32 %v773, %v2299
  %2301 = vmatmul.bf16.gmra.mxu0 %v624
  %v2302 = vpop.f32.mrf.mxu0
  %v2303 = vadd.f32 %v773, %v2302
  %v2304 = vpop.f32.mrf.mxu0
  %v2305 = vadd.f32 %v773, %v2304
  %2306 = vmatmul.bf16.gmra.mxu0 %v626
  %v2307 = vpop.f32.mrf.mxu0
  %v2308 = vadd.f32 %v773, %v2307
  %v2309 = vpop.f32.mrf.mxu0
  %v2310 = vadd.f32 %v773, %v2309
  %2311 = vmatmul.bf16.gmra.mxu0 %v628
  %v2312 = vpop.f32.mrf.mxu0
  %v2313 = vadd.f32 %v773, %v2312
  %v2314 = vpop.f32.mrf.mxu0
  %v2315 = vadd.f32 %v773, %v2314
  %2316 = vmatmul.bf16.gmra.mxu0 %v630
  %v2317 = vpop.f32.mrf.mxu0
  %v2318 = vadd.f32 %v773, %v2317
  %v2319 = vpop.f32.mrf.mxu0
  %v2320 = vadd.f32 %v773, %v2319
  %2321 = vmatmul.bf16.gmra.mxu0 %v632
  %v2322 = vpop.f32.mrf.mxu0
  %v2323 = vadd.f32 %v773, %v2322
  %v2324 = vpop.f32.mrf.mxu0
  %v2325 = vadd.f32 %v773, %v2324
  %2326 = vmatmul.bf16.gmra.mxu0 %v634
  %v2327 = vpop.f32.mrf.mxu0
  %v2328 = vadd.f32 %v773, %v2327
  %v2329 = vpop.f32.mrf.mxu0
  %v2330 = vadd.f32 %v773, %v2329
  %2331 = vmatmul.bf16.gmra.mxu0 %v636
  %v2332 = vpop.f32.mrf.mxu0
  %v2333 = vadd.f32 %v773, %v2332
  %v2334 = vpop.f32.mrf.mxu0
  %v2335 = vadd.f32 %v773, %v2334
  %2336 = vdwg.mxu0
  %2337 = vmatpush.bf16.msra.mxu0 %v1244
  %2338 = vmatpush.bf16.msra.mxu0 %v1237
  %2339 = vmatpush.bf16.msra.mxu0 %v1230
  %2340 = vmatpush.bf16.msra.mxu0 %v1223
  %2341 = vmatpush.bf16.msra.mxu0 %v1216
  %2342 = vmatpush.bf16.msra.mxu0 %v1209
  %2343 = vmatpush.bf16.msra.mxu0 %v1202
  %2344 = vmatpush.bf16.msra.mxu0 %v1195
  %2345 = vmatmul.bf16.gmra.mxu0 %v607
  %v2346 = vpop.f32.mrf.mxu0
  %v2347 = vadd.f32 %v2258, %v2346
  %v2348 = vpop.f32.mrf.mxu0
  %v2349 = vadd.f32 %v2260, %v2348
  %2350 = vmatmul.bf16.gmra.mxu0 %v609
  %v2351 = vpop.f32.mrf.mxu0
  %v2352 = vadd.f32 %v2263, %v2351
  %v2353 = vpop.f32.mrf.mxu0
  %v2354 = vadd.f32 %v2265, %v2353
  %2355 = vmatmul.bf16.gmra.mxu0 %v611
  %v2356 = vpop.f32.mrf.mxu0
  %v2357 = vadd.f32 %v2268, %v2356
  %v2358 = vpop.f32.mrf.mxu0
  %v2359 = vadd.f32 %v2270, %v2358
  %2360 = vmatmul.bf16.gmra.mxu0 %v613
  %v2361 = vpop.f32.mrf.mxu0
  %v2362 = vadd.f32 %v2273, %v2361
  %v2363 = vpop.f32.mrf.mxu0
  %v2364 = vadd.f32 %v2275, %v2363
  %2365 = vmatmul.bf16.gmra.mxu0 %v615
  %v2366 = vpop.f32.mrf.mxu0
  %v2367 = vadd.f32 %v2278, %v2366
  %v2368 = vpop.f32.mrf.mxu0
  %v2369 = vadd.f32 %v2280, %v2368
  %2370 = vmatmul.bf16.gmra.mxu0 %v617
  %v2371 = vpop.f32.mrf.mxu0
  %v2372 = vadd.f32 %v2283, %v2371
  %v2373 = vpop.f32.mrf.mxu0
  %v2374 = vadd.f32 %v2285, %v2373
  %2375 = vmatmul.bf16.gmra.mxu0 %v619
  %v2376 = vpop.f32.mrf.mxu0
  %v2377 = vadd.f32 %v2288, %v2376
  %v2378 = vpop.f32.mrf.mxu0
  %v2379 = vadd.f32 %v2290, %v2378
  %2380 = vmatmul.bf16.gmra.mxu0 %v621
  %v2381 = vpop.f32.mrf.mxu0
  %v2382 = vadd.f32 %v2293, %v2381
  %v2383 = vpop.f32.mrf.mxu0
  %v2384 = vadd.f32 %v2295, %v2383
  %2385 = vmatmul.bf16.gmra.mxu0 %v623
  %v2386 = vpop.f32.mrf.mxu0
  %v2387 = vadd.f32 %v2298, %v2386
  %v2388 = vpop.f32.mrf.mxu0
  %v2389 = vadd.f32 %v2300, %v2388
  %2390 = vmatmul.bf16.gmra.mxu0 %v625
  %v2391 = vpop.f32.mrf.mxu0
  %v2392 = vadd.f32 %v2303, %v2391
  %v2393 = vpop.f32.mrf.mxu0
  %v2394 = vadd.f32 %v2305, %v2393
  %2395 = vmatmul.bf16.gmra.mxu0 %v627
  %v2396 = vpop.f32.mrf.mxu0
  %v2397 = vadd.f32 %v2308, %v2396
  %v2398 = vpop.f32.mrf.mxu0
  %v2399 = vadd.f32 %v2310, %v2398
  %2400 = vmatmul.bf16.gmra.mxu0 %v629
  %v2401 = vpop.f32.mrf.mxu0
  %v2402 = vadd.f32 %v2313, %v2401
  %v2403 = vpop.f32.mrf.mxu0
  %v2404 = vadd.f32 %v2315, %v2403
  %2405 = vmatmul.bf16.gmra.mxu0 %v631
  %v2406 = vpop.f32.mrf.mxu0
  %v2407 = vadd.f32 %v2318, %v2406
  %v2408 = vpop.f32.mrf.mxu0
  %v2409 = vadd.f32 %v2320, %v2408
  %2410 = vmatmul.bf16.gmra.mxu0 %v633
  %v2411 = vpop.f32.mrf.mxu0
  %v2412 = vadd.f32 %v2323, %v2411
  %v2413 = vpop.f32.mrf.mxu0
  %v2414 = vadd.f32 %v2325, %v2413
  %2415 = vmatmul.bf16.gmra.mxu0 %v635
  %v2416 = vpop.f32.mrf.mxu0
  %v2417 = vadd.f32 %v2328, %v2416
  %v2418 = vpop.f32.mrf.mxu0
  %v2419 = vadd.f32 %v2330, %v2418
  %2420 = vmatmul.bf16.gmra.mxu0 %v637
  %v2421 = vpop.f32.mrf.mxu0
  %v2422 = vadd.f32 %v2333, %v2421
  %v2423 = vpop.f32.mrf.mxu0
  %v2424 = vadd.f32 %v2335, %v2423
  %2425 = vdwg.mxu0
  %2426 = vmatpush.bf16.msra.mxu0 %v1189
  %2427 = vmatpush.bf16.msra.mxu0 %v1182
  %2428 = vmatpush.bf16.msra.mxu0 %v1175
  %2429 = vmatpush.bf16.msra.mxu0 %v1168
  %2430 = vmatpush.bf16.msra.mxu0 %v1161
  %2431 = vmatpush.bf16.msra.mxu0 %v1154
  %2432 = vmatpush.bf16.msra.mxu0 %v1147
  %2433 = vmatpush.bf16.msra.mxu0 %v1140
  %2434 = vmatmul.bf16.gmra.mxu0 %v606
  %v2435 = vpop.f32.mrf.mxu0
  %v2436 = vadd.f32 %v774, %v2435
  %v2437 = vpop.f32.mrf.mxu0
  %v2438 = vadd.f32 %v774, %v2437
  %2439 = vmatmul.bf16.gmra.mxu0 %v608
  %v2440 = vpop.f32.mrf.mxu0
  %v2441 = vadd.f32 %v774, %v2440
  %v2442 = vpop.f32.mrf.mxu0
  %v2443 = vadd.f32 %v774, %v2442
  %2444 = vmatmul.bf16.gmra.mxu0 %v610
  %v2445 = vpop.f32.mrf.mxu0
  %v2446 = vadd.f32 %v774, %v2445
  %v2447 = vpop.f32.mrf.mxu0
  %v2448 = vadd.f32 %v774, %v2447
  %2449 = vmatmul.bf16.gmra.mxu0 %v612
  %v2450 = vpop.f32.mrf.mxu0
  %v2451 = vadd.f32 %v774, %v2450
  %v2452 = vpop.f32.mrf.mxu0
  %v2453 = vadd.f32 %v774, %v2452
  %2454 = vmatmul.bf16.gmra.mxu0 %v614
  %v2455 = vpop.f32.mrf.mxu0
  %v2456 = vadd.f32 %v774, %v2455
  %v2457 = vpop.f32.mrf.mxu0
  %v2458 = vadd.f32 %v774, %v2457
  %2459 = vmatmul.bf16.gmra.mxu0 %v616
  %v2460 = vpop.f32.mrf.mxu0
  %v2461 = vadd.f32 %v774, %v2460
  %v2462 = vpop.f32.mrf.mxu0
  %v2463 = vadd.f32 %v774, %v2462
  %2464 = vmatmul.bf16.gmra.mxu0 %v618
  %v2465 = vpop.f32.mrf.mxu0
  %v2466 = vadd.f32 %v774, %v2465
  %v2467 = vpop.f32.mrf.mxu0
  %v2468 = vadd.f32 %v774, %v2467
  %2469 = vmatmul.bf16.gmra.mxu0 %v620
  %v2470 = vpop.f32.mrf.mxu0
  %v2471 = vadd.f32 %v774, %v2470
  %v2472 = vpop.f32.mrf.mxu0
  %v2473 = vadd.f32 %v774, %v2472
  %2474 = vmatmul.bf16.gmra.mxu0 %v622
  %v2475 = vpop.f32.mrf.mxu0
  %v2476 = vadd.f32 %v774, %v2475
  %v2477 = vpop.f32.mrf.mxu0
  %v2478 = vadd.f32 %v774, %v2477
  %2479 = vmatmul.bf16.gmra.mxu0 %v624
  %v2480 = vpop.f32.mrf.mxu0
  %v2481 = vadd.f32 %v774, %v2480
  %v2482 = vpop.f32.mrf.mxu0
  %v2483 = vadd.f32 %v774, %v2482
  %2484 = vmatmul.bf16.gmra.mxu0 %v626
  %v2485 = vpop.f32.mrf.mxu0
  %v2486 = vadd.f32 %v774, %v2485
  %v2487 = vpop.f32.mrf.mxu0
  %v2488 = vadd.f32 %v774, %v2487
  %2489 = vmatmul.bf16.gmra.mxu0 %v628
  %v2490 = vpop.f32.mrf.mxu0
  %v2491 = vadd.f32 %v774, %v2490
  %v2492 = vpop.f32.mrf.mxu0
  %v2493 = vadd.f32 %v774, %v2492
  %2494 = vmatmul.bf16.gmra.mxu0 %v630
  %v2495 = vpop.f32.mrf.mxu0
  %v2496 = vadd.f32 %v774, %v2495
  %v2497 = vpop.f32.mrf.mxu0
  %v2498 = vadd.f32 %v774, %v2497
  %2499 = vmatmul.bf16.gmra.mxu0 %v632
  %v2500 = vpop.f32.mrf.mxu0
  %v2501 = vadd.f32 %v774, %v2500
  %v2502 = vpop.f32.mrf.mxu0
  %v2503 = vadd.f32 %v774, %v2502
  %2504 = vmatmul.bf16.gmra.mxu0 %v634
  %v2505 = vpop.f32.mrf.mxu0
  %v2506 = vadd.f32 %v774, %v2505
  %v2507 = vpop.f32.mrf.mxu0
  %v2508 = vadd.f32 %v774, %v2507
  %2509 = vmatmul.bf16.gmra.mxu0 %v636
  %v2510 = vpop.f32.mrf.mxu0
  %v2511 = vadd.f32 %v774, %v2510
  %v2512 = vpop.f32.mrf.mxu0
  %v2513 = vadd.f32 %v774, %v2512
  %2514 = vdwg.mxu0
  %2515 = vmatpush.bf16.msra.mxu0 %v1245
  %2516 = vmatpush.bf16.msra.mxu0 %v1238
  %2517 = vmatpush.bf16.msra.mxu0 %v1231
  %2518 = vmatpush.bf16.msra.mxu0 %v1224
  %2519 = vmatpush.bf16.msra.mxu0 %v1217
  %2520 = vmatpush.bf16.msra.mxu0 %v1210
  %2521 = vmatpush.bf16.msra.mxu0 %v1203
  %2522 = vmatpush.bf16.msra.mxu0 %v1196
  %2523 = vmatmul.bf16.gmra.mxu0 %v607
  %v2524 = vpop.f32.mrf.mxu0
  %v2525 = vadd.f32 %v2436, %v2524
  %v2526 = vpop.f32.mrf.mxu0
  %v2527 = vadd.f32 %v2438, %v2526
  %2528 = vmatmul.bf16.gmra.mxu0 %v609
  %v2529 = vpop.f32.mrf.mxu0
  %v2530 = vadd.f32 %v2441, %v2529
  %v2531 = vpop.f32.mrf.mxu0
  %v2532 = vadd.f32 %v2443, %v2531
  %2533 = vmatmul.bf16.gmra.mxu0 %v611
  %v2534 = vpop.f32.mrf.mxu0
  %v2535 = vadd.f32 %v2446, %v2534
  %v2536 = vpop.f32.mrf.mxu0
  %v2537 = vadd.f32 %v2448, %v2536
  %2538 = vmatmul.bf16.gmra.mxu0 %v613
  %v2539 = vpop.f32.mrf.mxu0
  %v2540 = vadd.f32 %v2451, %v2539
  %v2541 = vpop.f32.mrf.mxu0
  %v2542 = vadd.f32 %v2453, %v2541
  %2543 = vmatmul.bf16.gmra.mxu0 %v615
  %v2544 = vpop.f32.mrf.mxu0
  %v2545 = vadd.f32 %v2456, %v2544
  %v2546 = vpop.f32.mrf.mxu0
  %v2547 = vadd.f32 %v2458, %v2546
  %2548 = vmatmul.bf16.gmra.mxu0 %v617
  %v2549 = vpop.f32.mrf.mxu0
  %v2550 = vadd.f32 %v2461, %v2549
  %v2551 = vpop.f32.mrf.mxu0
  %v2552 = vadd.f32 %v2463, %v2551
  %2553 = vmatmul.bf16.gmra.mxu0 %v619
  %v2554 = vpop.f32.mrf.mxu0
  %v2555 = vadd.f32 %v2466, %v2554
  %v2556 = vpop.f32.mrf.mxu0
  %v2557 = vadd.f32 %v2468, %v2556
  %2558 = vmatmul.bf16.gmra.mxu0 %v621
  %v2559 = vpop.f32.mrf.mxu0
  %v2560 = vadd.f32 %v2471, %v2559
  %v2561 = vpop.f32.mrf.mxu0
  %v2562 = vadd.f32 %v2473, %v2561
  %2563 = vmatmul.bf16.gmra.mxu0 %v623
  %v2564 = vpop.f32.mrf.mxu0
  %v2565 = vadd.f32 %v2476, %v2564
  %v2566 = vpop.f32.mrf.mxu0
  %v2567 = vadd.f32 %v2478, %v2566
  %2568 = vmatmul.bf16.gmra.mxu0 %v625
  %v2569 = vpop.f32.mrf.mxu0
  %v2570 = vadd.f32 %v2481, %v2569
  %v2571 = vpop.f32.mrf.mxu0
  %v2572 = vadd.f32 %v2483, %v2571
  %2573 = vmatmul.bf16.gmra.mxu0 %v627
  %v2574 = vpop.f32.mrf.mxu0
  %v2575 = vadd.f32 %v2486, %v2574
  %v2576 = vpop.f32.mrf.mxu0
  %v2577 = vadd.f32 %v2488, %v2576
  %2578 = vmatmul.bf16.gmra.mxu0 %v629
  %v2579 = vpop.f32.mrf.mxu0
  %v2580 = vadd.f32 %v2491, %v2579
  %v2581 = vpop.f32.mrf.mxu0
  %v2582 = vadd.f32 %v2493, %v2581
  %2583 = vmatmul.bf16.gmra.mxu0 %v631
  %v2584 = vpop.f32.mrf.mxu0
  %v2585 = vadd.f32 %v2496, %v2584
  %v2586 = vpop.f32.mrf.mxu0
  %v2587 = vadd.f32 %v2498, %v2586
  %2588 = vmatmul.bf16.gmra.mxu0 %v633
  %v2589 = vpop.f32.mrf.mxu0
  %v2590 = vadd.f32 %v2501, %v2589
  %v2591 = vpop.f32.mrf.mxu0
  %v2592 = vadd.f32 %v2503, %v2591
  %2593 = vmatmul.bf16.gmra.mxu0 %v635
  %v2594 = vpop.f32.mrf.mxu0
  %v2595 = vadd.f32 %v2506, %v2594
  %v2596 = vpop.f32.mrf.mxu0
  %v2597 = vadd.f32 %v2508, %v2596
  %2598 = vmatmul.bf16.gmra.mxu0 %v637
  %v2599 = vpop.f32.mrf.mxu0
  %v2600 = vadd.f32 %v2511, %v2599
  %v2601 = vpop.f32.mrf.mxu0
  %v2602 = vadd.f32 %v2513, %v2601
  %2603 = vdwg.mxu0
  %v2604 = vtanh.pop %v1457
  %v2605 = vtanh.pop %v1635
  %v2606 = vtanh.pop %v1813
  %v2607 = vtanh.pop %v1991
  %v2608 = vtanh.pop %v2169
  %v2609 = vtanh.pop %v2347
  %v2610 = vtanh.pop %v2525
  %v2611 = vtanh.pop %v1459
  %v2612 = vtanh.pop %v1637
  %v2613 = vtanh.pop %v1815
  %v2614 = vtanh.pop %v1993
  %v2615 = vtanh.pop %v2171
  %v2616 = vtanh.pop %v2349
  %v2617 = vtanh.pop %v2527
  %v2618 = vtanh.pop %v1462
  %v2619 = vtanh.pop %v1640
  %v2620 = vtanh.pop %v1818
  %v2621 = vtanh.pop %v1996
  %v2622 = vtanh.pop %v2174
  %v2623 = vtanh.pop %v2352
  %v2624 = vtanh.pop %v2530
  %v2625 = vtanh.pop %v1464
  %v2626 = vtanh.pop %v1642
  %v2627 = vtanh.pop %v1820
  %v2628 = vtanh.pop %v1998
  %v2629 = vtanh.pop %v2176
  %v2630 = vtanh.pop %v2354
  %v2631 = vtanh.pop %v2532
  %v2632 = vtanh.pop %v1467
  %v2633 = vtanh.pop %v1645
  %v2634 = vtanh.pop %v1823
  %v2635 = vtanh.pop %v2001
  %v2636 = vtanh.pop %v2179
  %v2637 = vtanh.pop %v2357
  %v2638 = vtanh.pop %v2535
  %v2639 = vtanh.pop %v1469
  %v2640 = vtanh.pop %v1647
  %v2641 = vtanh.pop %v1825
  %v2642 = vtanh.pop %v2003
  %v2643 = vtanh.pop %v2181
  %v2644 = vtanh.pop %v2359
  %v2645 = vtanh.pop %v2537
  %v2646 = vtanh.pop %v1472
  %v2647 = vtanh.pop %v1650
  %v2648 = vtanh.pop %v1828
  %v2649 = vtanh.pop %v2006
  %v2650 = vtanh.pop %v2184
  %v2651 = vtanh.pop %v2362
  %v2652 = vtanh.pop %v2540
  %v2653 = vtanh.pop %v1474
  %v2654 = vtanh.pop %v1652
  %v2655 = vtanh.pop %v1830
  %v2656 = vtanh.pop %v2008
  %v2657 = vtanh.pop %v2186
  %v2658 = vtanh.pop %v2364
  %v2659 = vtanh.pop %v2542
  %v2660 = vtanh.pop %v1477
  %v2661 = vtanh.pop %v1655
  %v2662 = vtanh.pop %v1833
  %v2663 = vtanh.pop %v2011
  %v2664 = vtanh.pop %v2189
  %v2665 = vtanh.pop %v2367
  %v2666 = vtanh.pop %v2545
  %v2667 = vtanh.pop %v1479
  %v2668 = vtanh.pop %v1657
  %v2669 = vtanh.pop %v1835
  %v2670 = vtanh.pop %v2013
  %v2671 = vtanh.pop %v2191
  %v2672 = vtanh.pop %v2369
  %v2673 = vtanh.pop %v2547
  %v2674 = vtanh.pop %v1482
  %v2675 = vtanh.pop %v1660
  %v2676 = vtanh.pop %v1838
  %v2677 = vtanh.pop %v2016
  %v2678 = vtanh.pop %v2194
  %v2679 = vtanh.pop %v2372
  %v2680 = vtanh.pop %v2550
  %v2681 = vtanh.pop %v1484
  %v2682 = vtanh.pop %v1662
  %v2683 = vtanh.pop %v1840
  %v2684 = vtanh.pop %v2018
  %v2685 = vtanh.pop %v2196
  %v2686 = vtanh.pop %v2374
  %v2687 = vtanh.pop %v2552
  %v2688 = vtanh.pop %v1487
  %v2689 = vtanh.pop %v1665
  %v2690 = vtanh.pop %v1843
  %v2691 = vtanh.pop %v2021
  %v2692 = vtanh.pop %v2199
  %v2693 = vtanh.pop %v2377
  %v2694 = vtanh.pop %v2555
  %v2695 = vtanh.pop %v1489
  %v2696 = vtanh.pop %v1667
  %v2697 = vtanh.pop %v1845
  %v2698 = vtanh.pop %v2023
  %v2699 = vtanh.pop %v2201
  %v2700 = vtanh.pop %v2379
  %v2701 = vtanh.pop %v2557
  %v2702 = vtanh.pop %v1492
  %v2703 = vtanh.pop %v1670
  %v2704 = vtanh.pop %v1848
  %v2705 = vtanh.pop %v2026
  %v2706 = vtanh.pop %v2204
  %v2707 = vtanh.pop %v2382
  %v2708 = vtanh.pop %v2560
  %v2709 = vtanh.pop %v1494
  %v2710 = vtanh.pop %v1672
  %v2711 = vtanh.pop %v1850
  %v2712 = vtanh.pop %v2028
  %v2713 = vtanh.pop %v2206
  %v2714 = vtanh.pop %v2384
  %v2715 = vtanh.pop %v2562
  %v2716 = vtanh.pop %v1497
  %v2717 = vtanh.pop %v1675
  %v2718 = vtanh.pop %v1853
  %v2719 = vtanh.pop %v2031
  %v2720 = vtanh.pop %v2209
  %v2721 = vtanh.pop %v2387
  %v2722 = vtanh.pop %v2565
  %v2723 = vtanh.pop %v1499
  %v2724 = vtanh.pop %v1677
  %v2725 = vtanh.pop %v1855
  %v2726 = vtanh.pop %v2033
  %v2727 = vtanh.pop %v2211
  %v2728 = vtanh.pop %v2389
  %v2729 = vtanh.pop %v2567
  %v2730 = vtanh.pop %v1502
  %v2731 = vtanh.pop %v1680
  %v2732 = vtanh.pop %v1858
  %v2733 = vtanh.pop %v2036
  %v2734 = vtanh.pop %v2214
  %v2735 = vtanh.pop %v2392
  %v2736 = vtanh.pop %v2570
  %v2737 = vtanh.pop %v1504
  %v2738 = vtanh.pop %v1682
  %v2739 = vtanh.pop %v1860
  %v2740 = vtanh.pop %v2038
  %v2741 = vtanh.pop %v2216
  %v2742 = vtanh.pop %v2394
  %v2743 = vtanh.pop %v2572
  %v2744 = vtanh.pop %v1507
  %v2745 = vtanh.pop %v1685
  %v2746 = vtanh.pop %v1863
  %v2747 = vtanh.pop %v2041
  %v2748 = vtanh.pop %v2219
  %v2749 = vtanh.pop %v2397
  %v2750 = vtanh.pop %v2575
  %v2751 = vtanh.pop %v1509
  %v2752 = vtanh.pop %v1687
  %v2753 = vtanh.pop %v1865
  %v2754 = vtanh.pop %v2043
  %v2755 = vtanh.pop %v2221
  %v2756 = vtanh.pop %v2399
  %v2757 = vtanh.pop %v2577
  %v2758 = vtanh.pop %v1512
  %v2759 = vtanh.pop %v1690
  %v2760 = vtanh.pop %v1868
  %v2761 = vtanh.pop %v2046
  %v2762 = vtanh.pop %v2224
  %v2763 = vtanh.pop %v2402
  %v2764 = vtanh.pop %v2580
  %v2765 = vtanh.pop %v1514
  %v2766 = vtanh.pop %v1692
  %v2767 = vtanh.pop %v1870
  %v2768 = vtanh.pop %v2048
  %v2769 = vtanh.pop %v2226
  %v2770 = vtanh.pop %v2404
  %v2771 = vtanh.pop %v2582
  %v2772 = vtanh.pop %v1517
  %v2773 = vtanh.pop %v1695
  %v2774 = vtanh.pop %v1873
  %v2775 = vtanh.pop %v2051
  %v2776 = vtanh.pop %v2229
  %v2777 = vtanh.pop %v2407
  %v2778 = vtanh.pop %v2585
  %v2779 = vtanh.pop %v1519
  %v2780 = vtanh.pop %v1697
  %v2781 = vtanh.pop %v1875
  %v2782 = vtanh.pop %v2053
  %v2783 = vtanh.pop %v2231
  %v2784 = vtanh.pop %v2409
  %v2785 = vtanh.pop %v2587
  %v2786 = vtanh.pop %v1522
  %v2787 = vtanh.pop %v1700
  %v2788 = vtanh.pop %v1878
  %v2789 = vtanh.pop %v2056
  %v2790 = vtanh.pop %v2234
  %v2791 = vtanh.pop %v2412
  %v2792 = vtanh.pop %v2590
  %v2793 = vtanh.pop %v1524
  %v2794 = vtanh.pop %v1702
  %v2795 = vtanh.pop %v1880
  %v2796 = vtanh.pop %v2058
  %v2797 = vtanh.pop %v2236
  %v2798 = vtanh.pop %v2414
  %v2799 = vtanh.pop %v2592
  %v2800 = vtanh.pop %v1527
  %v2801 = vtanh.pop %v1705
  %v2802 = vtanh.pop %v1883
  %v2803 = vtanh.pop %v2061
  %v2804 = vtanh.pop %v2239
  %v2805 = vtanh.pop %v2417
  %v2806 = vtanh.pop %v2595
  %v2807 = vtanh.pop %v1529
  %v2808 = vtanh.pop %v1707
  %v2809 = vtanh.pop %v1885
  %v2810 = vtanh.pop %v2063
  %v2811 = vtanh.pop %v2241
  %v2812 = vtanh.pop %v2419
  %v2813 = vtanh.pop %v2597
  %v2814 = vtanh.pop %v1532
  %v2815 = vtanh.pop %v1710
  %v2816 = vtanh.pop %v1888
  %v2817 = vtanh.pop %v2066
  %v2818 = vtanh.pop %v2244
  %v2819 = vtanh.pop %v2422
  %v2820 = vtanh.pop %v2600
  %v2821 = vtanh.pop %v1534
  %v2822 = vtanh.pop %v1712
  %v2823 = vtanh.pop %v1890
  %v2824 = vtanh.pop %v2068
  %v2825 = vtanh.pop %v2246
  %v2826 = vtanh.pop %v2424
  %v2827 = vtanh.pop %v2602
  %v2828 = vpack.c.bf16 %v2605, %v2604
  %v2829 = vpack.c.bf16 %v2607, %v2606
  %v2830 = vpack.c.bf16 %v2609, %v2608
  %v2831 = vpack.c.bf16 %v2610, %v2610
  %v2832 = vpack.c.bf16 %v2612, %v2611
  %v2833 = vpack.c.bf16 %v2614, %v2613
  %v2834 = vpack.c.bf16 %v2616, %v2615
  %v2835 = vpack.c.bf16 %v2617, %v2617
  %v2836 = vpack.c.bf16 %v2619, %v2618
  %v2837 = vpack.c.bf16 %v2621, %v2620
  %v2838 = vpack.c.bf16 %v2623, %v2622
  %v2839 = vpack.c.bf16 %v2624, %v2624
  %v2840 = vpack.c.bf16 %v2626, %v2625
  %v2841 = vpack.c.bf16 %v2628, %v2627
  %v2842 = vpack.c.bf16 %v2630, %v2629
  %v2843 = vpack.c.bf16 %v2631, %v2631
  %v2844 = vpack.c.bf16 %v2633, %v2632
  %v2845 = vpack.c.bf16 %v2635, %v2634
  %v2846 = vpack.c.bf16 %v2637, %v2636
  %v2847 = vpack.c.bf16 %v2638, %v2638
  %v2848 = vpack.c.bf16 %v2640, %v2639
  %v2849 = vpack.c.bf16 %v2642, %v2641
  %v2850 = vpack.c.bf16 %v2644, %v2643
  %v2851 = vpack.c.bf16 %v2645, %v2645
  %v2852 = vpack.c.bf16 %v2647, %v2646
  %v2853 = vpack.c.bf16 %v2649, %v2648
  %v2854 = vpack.c.bf16 %v2651, %v2650
  %v2855 = vpack.c.bf16 %v2652, %v2652
  %v2856 = vpack.c.bf16 %v2654, %v2653
  %v2857 = vpack.c.bf16 %v2656, %v2655
  %v2858 = vpack.c.bf16 %v2658, %v2657
  %v2859 = vpack.c.bf16 %v2659, %v2659
  %v2860 = vpack.c.bf16 %v2661, %v2660
  %v2861 = vpack.c.bf16 %v2663, %v2662
  %v2862 = vpack.c.bf16 %v2665, %v2664
  %v2863 = vpack.c.bf16 %v2666, %v2666
  %v2864 = vpack.c.bf16 %v2668, %v2667
  %v2865 = vpack.c.bf16 %v2670, %v2669
  %v2866 = vpack.c.bf16 %v2672, %v2671
  %v2867 = vpack.c.bf16 %v2673, %v2673
  %v2868 = vpack.c.bf16 %v2675, %v2674
  %v2869 = vpack.c.bf16 %v2677, %v2676
  %v2870 = vpack.c.bf16 %v2679, %v2678
  %v2871 = vpack.c.bf16 %v2680, %v2680
  %v2872 = vpack.c.bf16 %v2682, %v2681
  %v2873 = vpack.c.bf16 %v2684, %v2683
  %v2874 = vpack.c.bf16 %v2686, %v2685
  %v2875 = vpack.c.bf16 %v2687, %v2687
  %v2876 = vpack.c.bf16 %v2689, %v2688
  %v2877 = vpack.c.bf16 %v2691, %v2690
  %v2878 = vpack.c.bf16 %v2693, %v2692
  %v2879 = vpack.c.bf16 %v2694, %v2694
  %v2880 = vpack.c.bf16 %v2696, %v2695
  %v2881 = vpack.c.bf16 %v2698, %v2697
  %v2882 = vpack.c.bf16 %v2700, %v2699
  %v2883 = vpack.c.bf16 %v2701, %v2701
  %v2884 = vpack.c.bf16 %v2703, %v2702
  %v2885 = vpack.c.bf16 %v2705, %v2704
  %v2886 = vpack.c.bf16 %v2707, %v2706
  %v2887 = vpack.c.bf16 %v2708, %v2708
  %v2888 = vpack.c.bf16 %v2710, %v2709
  %v2889 = vpack.c.bf16 %v2712, %v2711
  %v2890 = vpack.c.bf16 %v2714, %v2713
  %v2891 = vpack.c.bf16 %v2715, %v2715
  %v2892 = vpack.c.bf16 %v2717, %v2716
  %v2893 = vpack.c.bf16 %v2719, %v2718
  %v2894 = vpack.c.bf16 %v2721, %v2720
  %v2895 = vpack.c.bf16 %v2722, %v2722
  %v2896 = vpack.c.bf16 %v2724, %v2723
  %v2897 = vpack.c.bf16 %v2726, %v2725
  %v2898 = vpack.c.bf16 %v2728, %v2727
  %v2899 = vpack.c.bf16 %v2729, %v2729
  %v2900 = vpack.c.bf16 %v2731, %v2730
  %v2901 = vpack.c.bf16 %v2733, %v2732
  %v2902 = vpack.c.bf16 %v2735, %v2734
  %v2903 = vpack.c.bf16 %v2736, %v2736
  %v2904 = vpack.c.bf16 %v2738, %v2737
  %v2905 = vpack.c.bf16 %v2740, %v2739
  %v2906 = vpack.c.bf16 %v2742, %v2741
  %v2907 = vpack.c.bf16 %v2743, %v2743
  %v2908 = vpack.c.bf16 %v2745, %v2744
  %v2909 = vpack.c.bf16 %v2747, %v2746
  %v2910 = vpack.c.bf16 %v2749, %v2748
  %v2911 = vpack.c.bf16 %v2750, %v2750
  %v2912 = vpack.c.bf16 %v2752, %v2751
  %v2913 = vpack.c.bf16 %v2754, %v2753
  %v2914 = vpack.c.bf16 %v2756, %v2755
  %v2915 = vpack.c.bf16 %v2757, %v2757
  %v2916 = vpack.c.bf16 %v2759, %v2758
  %v2917 = vpack.c.bf16 %v2761, %v2760
  %v2918 = vpack.c.bf16 %v2763, %v2762
  %v2919 = vpack.c.bf16 %v2764, %v2764
  %v2920 = vpack.c.bf16 %v2766, %v2765
  %v2921 = vpack.c.bf16 %v2768, %v2767
  %v2922 = vpack.c.bf16 %v2770, %v2769
  %v2923 = vpack.c.bf16 %v2771, %v2771
  %v2924 = vpack.c.bf16 %v2773, %v2772
  %v2925 = vpack.c.bf16 %v2775, %v2774
  %v2926 = vpack.c.bf16 %v2777, %v2776
  %v2927 = vpack.c.bf16 %v2778, %v2778
  %v2928 = vpack.c.bf16 %v2780, %v2779
  %v2929 = vpack.c.bf16 %v2782, %v2781
  %v2930 = vpack.c.bf16 %v2784, %v2783
  %v2931 = vpack.c.bf16 %v2785, %v2785
  %v2932 = vpack.c.bf16 %v2787, %v2786
  %v2933 = vpack.c.bf16 %v2789, %v2788
  %v2934 = vpack.c.bf16 %v2791, %v2790
  %v2935 = vpack.c.bf16 %v2792, %v2792
  %v2936 = vpack.c.bf16 %v2794, %v2793
  %v2937 = vpack.c.bf16 %v2796, %v2795
  %v2938 = vpack.c.bf16 %v2798, %v2797
  %v2939 = vpack.c.bf16 %v2799, %v2799
  %v2940 = vpack.c.bf16 %v2801, %v2800
  %v2941 = vpack.c.bf16 %v2803, %v2802
  %v2942 = vpack.c.bf16 %v2805, %v2804
  %v2943 = vpack.c.bf16 %v2806, %v2806
  %v2944 = vpack.c.bf16 %v2808, %v2807
  %v2945 = vpack.c.bf16 %v2810, %v2809
  %v2946 = vpack.c.bf16 %v2812, %v2811
  %v2947 = vpack.c.bf16 %v2813, %v2813
  %v2948 = vpack.c.bf16 %v2815, %v2814
  %v2949 = vpack.c.bf16 %v2817, %v2816
  %v2950 = vpack.c.bf16 %v2819, %v2818
  %v2951 = vpack.c.bf16 %v2820, %v2820
  %v2952 = vpack.c.bf16 %v2822, %v2821
  %v2953 = vpack.c.bf16 %v2824, %v2823
  %v2954 = vpack.c.bf16 %v2826, %v2825
  %v2955 = vpack.c.bf16 %v2827, %v2827
  %2956 = vst [vmem:[%s5] sm:$0xff] %v2828
  %2957 = vst [vmem:[%s5 + $0x8] sm:$0xff] %v2829
  %2958 = vst [vmem:[%s5 + $0x10] sm:$0xff] %v2830
  %2959 = vst [vmem:[%s5 + $0x18] sm:$0xf] %v2831
  %2960 = vst [vmem:[%s5 + $0x1c] sm:$0xff] %v2832
  %2961 = vst [vmem:[%s5 + $0x24] sm:$0xff] %v2833
  %2962 = vst [vmem:[%s5 + $0x2c] sm:$0xff] %v2834
  %2963 = vst [vmem:[%s5 + $0x34] sm:$0xf] %v2835
  %2964 = vst [vmem:[%s5 + $0x38] sm:$0xff] %v2836
  %2965 = vst [vmem:[%s5 + $0x40] sm:$0xff] %v2837
  %2966 = vst [vmem:[%s5 + $0x48] sm:$0xff] %v2838
  %2967 = vst [vmem:[%s5 + $0x50] sm:$0xf] %v2839
  %2968 = vst [vmem:[%s5 + $0x54] sm:$0xff] %v2840
  %2969 = vst [vmem:[%s5 + $0x5c] sm:$0xff] %v2841
  %2970 = vst [vmem:[%s5 + $0x64] sm:$0xff] %v2842
  %2971 = vst [vmem:[%s5 + $0x6c] sm:$0xf] %v2843
  %2972 = vst [vmem:[%s5 + $0x70] sm:$0xff] %v2844
  %2973 = vst [vmem:[%s5 + $0x78] sm:$0xff] %v2845
  %2974 = vst [vmem:[%s5 + $0x80] sm:$0xff] %v2846
  %2975 = vst [vmem:[%s5 + $0x88] sm:$0xf] %v2847
  %2976 = vst [vmem:[%s5 + $0x8c] sm:$0xff] %v2848
  %2977 = vst [vmem:[%s5 + $0x94] sm:$0xff] %v2849
  %2978 = vst [vmem:[%s5 + $0x9c] sm:$0xff] %v2850
  %2979 = vst [vmem:[%s5 + $0xa4] sm:$0xf] %v2851
  %2980 = vst [vmem:[%s5 + $0xa8] sm:$0xff] %v2852
  %2981 = vst [vmem:[%s5 + $0xb0] sm:$0xff] %v2853
  %2982 = vst [vmem:[%s5 + $0xb8] sm:$0xff] %v2854
  %2983 = vst [vmem:[%s5 + $0xc0] sm:$0xf] %v2855
  %2984 = vst [vmem:[%s5 + $0xc4] sm:$0xff] %v2856
  %2985 = vst [vmem:[%s5 + $0xcc] sm:$0xff] %v2857
  %2986 = vst [vmem:[%s5 + $0xd4] sm:$0xff] %v2858
  %2987 = vst [vmem:[%s5 + $0xdc] sm:$0xf] %v2859
  %2988 = vst [vmem:[%s5 + $0xe0] sm:$0xff] %v2860
  %2989 = vst [vmem:[%s5 + $0xe8] sm:$0xff] %v2861
  %2990 = vst [vmem:[%s5 + $0xf0] sm:$0xff] %v2862
  %2991 = vst [vmem:[%s5 + $0xf8] sm:$0xf] %v2863
  %2992 = vst [vmem:[%s5 + $0xfc] sm:$0xff] %v2864
  %2993 = vst [vmem:[%s5 + $0x104] sm:$0xff] %v2865
  %2994 = vst [vmem:[%s5 + $0x10c] sm:$0xff] %v2866
  %2995 = vst [vmem:[%s5 + $0x114] sm:$0xf] %v2867
  %2996 = vst [vmem:[%s5 + $0x118] sm:$0xff] %v2868
  %2997 = vst [vmem:[%s5 + $0x120] sm:$0xff] %v2869
  %2998 = vst [vmem:[%s5 + $0x128] sm:$0xff] %v2870
  %2999 = vst [vmem:[%s5 + $0x130] sm:$0xf] %v2871
  %3000 = vst [vmem:[%s5 + $0x134] sm:$0xff] %v2872
  %3001 = vst [vmem:[%s5 + $0x13c] sm:$0xff] %v2873
  %3002 = vst [vmem:[%s5 + $0x144] sm:$0xff] %v2874
  %3003 = vst [vmem:[%s5 + $0x14c] sm:$0xf] %v2875
  %3004 = vst [vmem:[%s5 + $0x150] sm:$0xff] %v2876
  %3005 = vst [vmem:[%s5 + $0x158] sm:$0xff] %v2877
  %3006 = vst [vmem:[%s5 + $0x160] sm:$0xff] %v2878
  %3007 = vst [vmem:[%s5 + $0x168] sm:$0xf] %v2879
  %3008 = vst [vmem:[%s5 + $0x16c] sm:$0xff] %v2880
  %3009 = vst [vmem:[%s5 + $0x174] sm:$0xff] %v2881
  %3010 = vst [vmem:[%s5 + $0x17c] sm:$0xff] %v2882
  %3011 = vst [vmem:[%s5 + $0x184] sm:$0xf] %v2883
  %3012 = vst [vmem:[%s5 + $0x188] sm:$0xff] %v2884
  %3013 = vst [vmem:[%s5 + $0x190] sm:$0xff] %v2885
  %3014 = vst [vmem:[%s5 + $0x198] sm:$0xff] %v2886
  %3015 = vst [vmem:[%s5 + $0x1a0] sm:$0xf] %v2887
  %3016 = vst [vmem:[%s5 + $0x1a4] sm:$0xff] %v2888
  %3017 = vst [vmem:[%s5 + $0x1ac] sm:$0xff] %v2889
  %3018 = vst [vmem:[%s5 + $0x1b4] sm:$0xff] %v2890
  %3019 = vst [vmem:[%s5 + $0x1bc] sm:$0xf] %v2891
  %3020 = vst [vmem:[%s5 + $0x1c0] sm:$0xff] %v2892
  %3021 = vst [vmem:[%s5 + $0x1c8] sm:$0xff] %v2893
  %3022 = vst [vmem:[%s5 + $0x1d0] sm:$0xff] %v2894
  %3023 = vst [vmem:[%s5 + $0x1d8] sm:$0xf] %v2895
  %3024 = vst [vmem:[%s5 + $0x1dc] sm:$0xff] %v2896
  %3025 = vst [vmem:[%s5 + $0x1e4] sm:$0xff] %v2897
  %3026 = vst [vmem:[%s5 + $0x1ec] sm:$0xff] %v2898
  %3027 = vst [vmem:[%s5 + $0x1f4] sm:$0xf] %v2899
  %3028 = vst [vmem:[%s5 + $0x1f8] sm:$0xff] %v2900
  %3029 = vst [vmem:[%s5 + $0x200] sm:$0xff] %v2901
  %3030 = vst [vmem:[%s5 + $0x208] sm:$0xff] %v2902
  %3031 = vst [vmem:[%s5 + $0x210] sm:$0xf] %v2903
  %3032 = vst [vmem:[%s5 + $0x214] sm:$0xff] %v2904
  %3033 = vst [vmem:[%s5 + $0x21c] sm:$0xff] %v2905
  %3034 = vst [vmem:[%s5 + $0x224] sm:$0xff] %v2906
  %3035 = vst [vmem:[%s5 + $0x22c] sm:$0xf] %v2907
  %3036 = vst [vmem:[%s5 + $0x230] sm:$0xff] %v2908
  %3037 = vst [vmem:[%s5 + $0x238] sm:$0xff] %v2909
  %3038 = vst [vmem:[%s5 + $0x240] sm:$0xff] %v2910
  %3039 = vst [vmem:[%s5 + $0x248] sm:$0xf] %v2911
  %3040 = vst [vmem:[%s5 + $0x24c] sm:$0xff] %v2912
  %3041 = vst [vmem:[%s5 + $0x254] sm:$0xff] %v2913
  %3042 = vst [vmem:[%s5 + $0x25c] sm:$0xff] %v2914
  %3043 = vst [vmem:[%s5 + $0x264] sm:$0xf] %v2915
  %3044 = vst [vmem:[%s5 + $0x268] sm:$0xff] %v2916
  %3045 = vst [vmem:[%s5 + $0x270] sm:$0xff] %v2917
  %3046 = vst [vmem:[%s5 + $0x278] sm:$0xff] %v2918
  %3047 = vst [vmem:[%s5 + $0x280] sm:$0xf] %v2919
  %3048 = vst [vmem:[%s5 + $0x284] sm:$0xff] %v2920
  %3049 = vst [vmem:[%s5 + $0x28c] sm:$0xff] %v2921
  %3050 = vst [vmem:[%s5 + $0x294] sm:$0xff] %v2922
  %3051 = vst [vmem:[%s5 + $0x29c] sm:$0xf] %v2923
  %3052 = vst [vmem:[%s5 + $0x2a0] sm:$0xff] %v2924
  %3053 = vst [vmem:[%s5 + $0x2a8] sm:$0xff] %v2925
  %3054 = vst [vmem:[%s5 + $0x2b0] sm:$0xff] %v2926
  %3055 = vst [vmem:[%s5 + $0x2b8] sm:$0xf] %v2927
  %3056 = vst [vmem:[%s5 + $0x2bc] sm:$0xff] %v2928
  %3057 = vst [vmem:[%s5 + $0x2c4] sm:$0xff] %v2929
  %3058 = vst [vmem:[%s5 + $0x2cc] sm:$0xff] %v2930
  %3059 = vst [vmem:[%s5 + $0x2d4] sm:$0xf] %v2931
  %3060 = vst [vmem:[%s5 + $0x2d8] sm:$0xff] %v2932
  %3061 = vst [vmem:[%s5 + $0x2e0] sm:$0xff] %v2933
  %3062 = vst [vmem:[%s5 + $0x2e8] sm:$0xff] %v2934
  %3063 = vst [vmem:[%s5 + $0x2f0] sm:$0xf] %v2935
  %3064 = vst [vmem:[%s5 + $0x2f4] sm:$0xff] %v2936
  %3065 = vst [vmem:[%s5 + $0x2fc] sm:$0xff] %v2937
  %3066 = vst [vmem:[%s5 + $0x304] sm:$0xff] %v2938
  %3067 = vst [vmem:[%s5 + $0x30c] sm:$0xf] %v2939
  %3068 = vst [vmem:[%s5 + $0x310] sm:$0xff] %v2940
  %3069 = vst [vmem:[%s5 + $0x318] sm:$0xff] %v2941
  %3070 = vst [vmem:[%s5 + $0x320] sm:$0xff] %v2942
  %3071 = vst [vmem:[%s5 + $0x328] sm:$0xf] %v2943
  %3072 = vst [vmem:[%s5 + $0x32c] sm:$0xff] %v2944
  %3073 = vst [vmem:[%s5 + $0x334] sm:$0xff] %v2945
  %3074 = vst [vmem:[%s5 + $0x33c] sm:$0xff] %v2946
  %3075 = vst [vmem:[%s5 + $0x344] sm:$0xf] %v2947
  %3076 = vst [vmem:[%s5 + $0x348] sm:$0xff] %v2948
  %3077 = vst [vmem:[%s5 + $0x350] sm:$0xff] %v2949
  %3078 = vst [vmem:[%s5 + $0x358] sm:$0xff] %v2950
  %3079 = vst [vmem:[%s5 + $0x360] sm:$0xf] %v2951
  %3080 = vst [vmem:[%s5 + $0x364] sm:$0xff] %v2952
  %3081 = vst [vmem:[%s5 + $0x36c] sm:$0xff] %v2953
  %3082 = vst [vmem:[%s5 + $0x374] sm:$0xff] %v2954
  %3083 = vst [vmem:[%s5 + $0x37c] sm:$0xf] %v2955
  // Predicated region
  $region22: #{generator_forward.1} parent=0 // pred_check
    _
  $region23: #{generator_forward.1} parent=0 // pred_check_branch
    %3085 = sbr.rel (0) target = $region25
  $region24: #{generator_forward.1} parent=0 // pred_region
    _
  $region25: #{generator_forward.1} parent=0 // pred_fallthru
    _
  // Predicated region
  $region26: #{generator_forward.1} parent=0 // pred_check
    _
  $region27: #{generator_forward.1} parent=0 // pred_check_branch
    %3087 = sbr.rel (0) target = $region29
  $region28: #{generator_forward.1} parent=0 // pred_region
    _
  $region29: #{generator_forward.1} parent=0 // pred_fallthru
    _

</llo_original>
